<compile_context>
chip_gen: v6e
topology: v6e:2x2x1
jax: 0.10.0
libtpu: 0.0.40
codegen_flags: <defaults>
</compile_context>

<pallas_src>
import functools

import jax
import jax.numpy as jnp
import numpy as np
from jax.experimental import pallas as pl
from jax.experimental.pallas import tpu as pltpu


def _round_up(x, m):
    return ((x + m - 1) // m) * m


def _router_kernel(x_ref, w1_ref, b1_ref, w2_ref, b2_ref,
                   out_ref, sums_ref, acc_ref, *,
                   threshold, max_experts, num_experts,
                   hp_steps, log_off, w_off, store_w, n_valid):
    # TODO(synk): on v6e/v7x, split the token tile into 2 row halves inside
    # the kernel so the scheduler can hide the sigmoid/softmax/top-k epilogue
    # of half j under the MXU matmuls of half j+1.
    j = pl.program_id(1)

    # First layer chunk: f32 accumulation on the MXU.  bf16 inputs/weights
    # are the fast path on v6e/v7x (f32 operands use the multi-pass MXU mode).
    h = jnp.dot(x_ref[...], w1_ref[...], preferred_element_type=jnp.float32)
    h = jnp.maximum(h + b1_ref[...], 0.0)
    w2 = w2_ref[...]
    partial = jnp.dot(h.astype(w2.dtype), w2, preferred_element_type=jnp.float32)

    def _epilogue(logits):
        e = num_experts
        ep = logits.shape[-1]
        tn = logits.shape[0]

        gates = jax.nn.sigmoid(logits)
        col = jax.lax.broadcasted_iota(jnp.int32, logits.shape, 1)

        mask = gates > threshold
        if ep > e:
            # Padded expert columns (logits == -1e9, gate == 0) must never be
            # selected, even if threshold < 0.
            mask = mask & (col < e)

        if max_experts > 0:
            # Keep the k largest thresholded gates per token (lowest column
            # index wins ties), matching torch.topk + scatter(top_k_gates > 0).
            # TODO(synk): if a bundle dump shows this XLU-bound, fuse the
            # max + min-index tie-break into one packed-key cross-lane reduce.
            k = min(max_experts, e)
            vals = jnp.where(mask, gates, 0.0)
            new_mask = jnp.zeros(logits.shape, dtype=jnp.bool_)
            for _ in range(k):
                row_max = jnp.max(vals, axis=-1, keepdims=True)
                is_max = (vals == row_max) & (row_max > 0.0)
                min_col = jnp.min(jnp.where(is_max, col, ep), axis=-1,
                                  keepdims=True)
                sel = is_max & (col == min_col)
                new_mask = new_mask | sel
                vals = jnp.where(sel, -1.0, vals)
            mask = new_mask

        mask_f = mask.astype(jnp.float32)

        # Softmax over experts (feeds the load-balancing loss); padded expert
        # columns contribute exp(-huge) == 0.
        lmax = jnp.max(logits, axis=-1, keepdims=True)
        ex = jnp.exp(logits - lmax)
        probs = ex * pl.reciprocal(jnp.sum(ex, axis=-1, keepdims=True),
                                   approx=False)

        weights = gates * mask_f
        wnorm = weights * pl.reciprocal(
            jnp.sum(weights, axis=-1, keepdims=True) + 1e-6, approx=False)

        # Lane-packed output slab [logits | wnorm]; direct slice stores, no
        # concat temp.  store_w == Ep for 128-aligned layouts (unmasked vst),
        # store_w == E for the tight-packed small-E layout.
        out_ref[:, log_off:log_off + store_w] = logits[:, :store_w]
        out_ref[:, w_off:w_off + store_w] = wnorm[:, :store_w]

        m_src, p_src = mask_f, probs
        if n_valid is not None:
            # Padded token rows must not contribute to the loss sums.
            row = (jax.lax.broadcasted_iota(jnp.int32, (tn, 1), 0)
                   + pl.program_id(0) * tn)
            rv = (row < n_valid).astype(jnp.float32)
            m_src = m_src * rv
            p_src = p_src * rv
        m_sum = jnp.sum(m_src, axis=0, keepdims=True)
        p_sum = jnp.sum(p_src, axis=0, keepdims=True)
        sums_ref[:, log_off:log_off + store_w] = m_sum[:, :store_w]
        sums_ref[:, w_off:w_off + store_w] = p_sum[:, :store_w]

    if hp_steps == 1:
        # Weights fully resident: no accumulator round-trip needed.
        _epilogue(partial + b2_ref[...])
    else:
        @pl.when(j == 0)
        def _():
            acc_ref[...] = partial

        @pl.when(j > 0)
        def _():
            acc_ref[...] = acc_ref[...] + partial

        @pl.when(j == hp_steps - 1)
        def _():
            _epilogue(acc_ref[...] + b2_ref[...])


def multi_expert_router(hidden_states, w1, b1, w2, b2, *,
                        threshold, max_experts_per_token, token_tile=None):
    """MultiExpertRouter forward pass on TPU via Pallas.

    hidden_states: [B, S, H] (f32 or bf16; bf16 is the fast MXU path)
    w1: [H, H//2], b1: [H//2], w2: [H//2, E], b2: [E]
    Returns a dict matching the PyTorch module's forward outputs.
    """
    B, S, H = hidden_states.shape
    Hh = w1.shape[1]
    E = w2.shape[1]
    N = B * S

    Hp = _round_up(Hh, 128)
    Ep = _round_up(E, 128)

    # Output-slab layout: tightly pack [logits | wnorm] when E << 128 (halves
    # the per-token HBM write), otherwise the 128-aligned layout (unmasked vst).
    tight_ow = _round_up(2 * E, 128)
    if tight_ow < 2 * Ep:
        OW, log_off, w_off, store_w = tight_ow, 0, E, E
    else:
        OW, log_off, w_off, store_w = 2 * Ep, 0, Ep, Ep

    x_bytes = jnp.dtype(hidden_states.dtype).itemsize
    w_bytes = max(jnp.dtype(w1.dtype).itemsize, jnp.dtype(w2.dtype).itemsize)

    # Per-TensorCore VMEM capacity: 128 MiB on v5e/v6e, 64 MiB on v7x.  Use
    # 0.7x for tiling decisions; never request more than 0.85x as the scoped
    # limit (leave headroom for Mosaic internal scratch).
    try:
        vmem_cap = int(pltpu.get_tpu_info().vmem_capacity_bytes)
    except Exception:
        vmem_cap = 64 * 1024 * 1024
    vmem_budget = int(0.7 * vmem_cap)

    # Hidden-chunking: keep w1/w2 fully resident when they fit in half the
    # budget, otherwise add an inner "arbitrary" grid axis over Hp chunks.
    resident_bytes = (H * Hp + Hp * Ep) * w_bytes + (Hp + Ep) * 4
    if resident_bytes <= vmem_budget // 2:
        t_hp = Hp
    else:
        per_lane = 2 * ((H + Ep) * w_bytes + 4)          # double-buffered chunks
        t_hp = max(128, ((vmem_budget // 2) // per_lane) // 128 * 128)
        t_hp = min(t_hp, Hp)
        while Hp % t_hp != 0:                            # chunks must tile Hp
            t_hp -= 128
    hp_steps = Hp // t_hp
    weights_resident = hp_steps == 1

    def _footprint(t, wf):
        f = wf * ((H * t_hp + t_hp * Ep) * w_bytes + (t_hp + Ep) * 4)   # weights
        f += 2 * t * H * x_bytes                      # x double buffer
        f += 2 * t * OW * 4 + 2 * OW * 4              # out slab + sums buffers
        f += t * Ep * 4                               # logits accumulator
        f += t * (t_hp * (4 + w_bytes) + 8 * Ep * 4)  # h / epilogue temporaries
        return f

    if token_tile is None:
        token_tile = 16
        for t in (512, 256, 128, 64, 32, 16):
            if t > max(16, _round_up(N, 16)):
                continue
            if _footprint(t, 1 if weights_resident else 2) <= vmem_budget:
                token_tile = t
                break
    else:
        token_tile = max(8, _round_up(int(token_tile), 8))

    N_pad = _round_up(N, token_tile)
    num_tiles = N_pad // token_tile

    x = hidden_states.reshape(N, H)
    if N_pad != N:
        x = jnp.pad(x, ((0, N_pad - N), (0, 0)))

    # Pad hidden//2 and expert dims to 128-lane multiples.  Padded expert
    # columns get bias -1e9 so gate == 0 and softmax prob == 0; padded hidden
    # columns are exact zeros after ReLU and contribute nothing.
    w1_p = jnp.zeros((H, Hp), w1.dtype).at[:, :Hh].set(w1)
    w2_p = jnp.zeros((Hp, Ep), w2.dtype).at[:Hh, :E].set(w2)
    b1_p = jnp.zeros((1, Hp), jnp.float32).at[:, :Hh].set(
        b1.astype(jnp.float32)[None, :])
    b2_p = jnp.full((1, Ep), -1e9, jnp.float32).at[:, :E].set(
        b2.astype(jnp.float32)[None, :])

    # Limit sized for the worst case (double-buffered weights, in case the
    # single-buffer request is rejected), capped below physical capacity.
    vmem_limit = int(min(0.85 * vmem_cap,
                         max(32 * 1024 * 1024,
                             1.3 * _footprint(token_tile, 2))))

    cost = pl.CostEstimate(
        flops=int(2 * N_pad * (H * Hp + Hp * Ep)),
        transcendentals=int(2 * N_pad * Ep),
        bytes_accessed=int(N_pad * H * x_bytes + N_pad * OW * 4
                           + num_tiles * OW * 4
                           + (H * Hp + Hp * Ep) * w_bytes + (Hp + Ep) * 4),
    )

    kernel = functools.partial(
        _router_kernel,
        threshold=float(threshold),
        max_experts=int(max_experts_per_token),
        num_experts=int(E),
        hp_steps=int(hp_steps),
        log_off=int(log_off), w_off=int(w_off), store_w=int(store_w),
        n_valid=None if N_pad == N else int(N),
    )

    out_shapes = (
        jax.ShapeDtypeStruct((N_pad, OW), jnp.float32),      # [logits | wnorm]
        jax.ShapeDtypeStruct((num_tiles, OW), jnp.float32),  # per-tile loss sums
    )

    def _call(single_buffer):
        def _wspec(shape, index_map, constant):
            if single_buffer and constant:
                # Grid-constant block: double-buffering it only burns VMEM.
                return pl.BlockSpec(shape, index_map,
                                    pipeline_mode=pl.Buffered(1))
            return pl.BlockSpec(shape, index_map)

        in_specs = [
            pl.BlockSpec((token_tile, H), lambda i, j: (i, 0)),          # x
            _wspec((H, t_hp), lambda i, j: (0, j), weights_resident),    # w1
            _wspec((1, t_hp), lambda i, j: (0, j), weights_resident),    # b1
            _wspec((t_hp, Ep), lambda i, j: (j, 0), weights_resident),   # w2
            _wspec((1, Ep), lambda i, j: (0, 0), True),                  # b2
        ]
        out_specs = [
            pl.BlockSpec((token_tile, OW), lambda i, j: (i, 0)),
            pl.BlockSpec((1, OW), lambda i, j: (i, 0)),
        ]
        return pl.pallas_call(
            kernel,
            out_shape=out_shapes,
            grid_spec=pltpu.PrefetchScalarGridSpec(
                num_scalar_prefetch=0,
                grid=(num_tiles, hp_steps),
                in_specs=in_specs,
                out_specs=out_specs,
                scratch_shapes=[pltpu.VMEM((token_tile, Ep), jnp.float32)],
            ),
            compiler_params=pltpu.CompilerParams(
                dimension_semantics=("parallel", "arbitrary"),
                vmem_limit_bytes=vmem_limit,
            ),
            cost_estimate=cost,
        )(x, w1_p, b1_p, w2_p, b2_p)

    try:
        slab, sums = _call(True)
    except Exception:
        # Pallas without BlockSpec(pipeline_mode=...) support: fall back to
        # default double-buffered resident weights.
        slab, sums = _call(False)

    logits = slab[:N, log_off:log_off + E]
    wnorm = slab[:N, w_off:w_off + E]
    # A selected expert always has gate > max(threshold, 0), hence a strictly
    # positive normalized weight, so the dispatch mask is recoverable here.
    mask = wnorm > 0.0

    mask_mean = jnp.sum(sums[:, log_off:log_off + E], axis=0) / float(N)
    prob_mean = jnp.sum(sums[:, w_off:w_off + E], axis=0) / float(N)
    loss = jnp.sum(mask_mean * prob_mean) * float(E)

    return {
        "dispatch_mask": mask.reshape(B, S, E),
        "weights": wnorm.reshape(B, S, E),
        "load_balancing_loss": loss,
        "router_logits": logits.reshape(B, S, E),
    }


def _reference(hidden_states, w1, b1, w2, b2, *, threshold, max_experts_per_token):
    """Pure-JAX reference mirroring the PyTorch forward, for validation."""
    B, S, H = hidden_states.shape
    E = w2.shape[1]
    x = hidden_states.reshape(-1, H).astype(jnp.float32)
    logits = jnp.maximum(x @ w1.astype(jnp.float32) + b1, 0.0) @ w2.astype(jnp.float32) + b2
    gates = jax.nn.sigmoid(logits)
    mask = gates > threshold
    if max_experts_per_token > 0:
        k = min(max_experts_per_token, E)
        vals = jnp.where(mask, gates, 0.0)
        topv, topi = jax.lax.top_k(vals, k)
        mask = jnp.zeros_like(gates, dtype=bool)
        rows = jnp.arange(x.shape[0])
        for j in range(k):
            mask = mask.at[rows, topi[:, j]].set(topv[:, j] > 0)
    probs = jax.nn.softmax(logits, axis=1)
    mask_f = mask.astype(jnp.float32)
    loss = jnp.sum(mask_f.mean(0) * probs.mean(0)) * E
    w = gates * mask_f
    wn = w / (w.sum(1, keepdims=True) + 1e-6)
    return {
        "dispatch_mask": mask.reshape(B, S, E),
        "weights": wn.reshape(B, S, E),
        "load_balancing_loss": loss,
        "router_logits": logits.reshape(B, S, E),
    }


if __name__ == "__main__":
    # Small deterministic config: B=2, S=8, H=32, num_experts=8
    B, S, H, E = 2, 8, 32, 8
    Hh = H // 2
    threshold = 0.5
    max_experts_per_token = 2

    key = jax.random.PRNGKey(0)
    kx, k1, k2, k3 = jax.random.split(key, 4)

    hidden_states = jax.random.normal(kx, (B, S, H), dtype=jnp.float32)

    # Deterministic parameter init (module spec: layer0 std = 0.01/num_experts, bias 0).
    w1 = jax.random.normal(k1, (H, Hh), dtype=jnp.float32) * (0.01 / E)
    b1 = jnp.zeros((Hh,), dtype=jnp.float32)
    bound = 1.0 / np.sqrt(Hh)
    w2 = jax.random.uniform(k2, (Hh, E), minval=-bound, maxval=bound, dtype=jnp.float32)
    b2 = jax.random.uniform(k3, (E,), minval=-bound, maxval=bound, dtype=jnp.float32)

    out = multi_expert_router(
        hidden_states, w1, b1, w2, b2,
        threshold=threshold, max_experts_per_token=max_experts_per_token,
    )
    jax.block_until_ready(out)

    ref = _reference(
        hidden_states, w1, b1, w2, b2,
        threshold=threshold, max_experts_per_token=max_experts_per_token,
    )

    np.testing.assert_allclose(np.asarray(out["router_logits"]),
                               np.asarray(ref["router_logits"]), rtol=1e-5, atol=1e-5)
    np.testing.assert_array_equal(np.asarray(out["dispatch_mask"]),
                                  np.asarray(ref["dispatch_mask"]))
    np.testing.assert_allclose(np.asarray(out["weights"]),
                               np.asarray(ref["weights"]), rtol=1e-5, atol=1e-5)
    np.testing.assert_allclose(float(out["load_balancing_loss"]),
                               float(ref["load_balancing_loss"]), rtol=1e-5, atol=1e-5)

    print("KERNEL_OK")
</pallas_src>

<mosaic_0001>
module attributes {stable_mosaic.version = 11 : i64} {
  func.func @_router_kernel(%arg0: i32, %arg1: i32, %arg2: memref<16x32xf32, #tpu.memory_space<vmem>>, %arg3: memref<32x128xf32, #tpu.memory_space<vmem>>, %arg4: memref<1x128xf32, #tpu.memory_space<vmem>>, %arg5: memref<128x128xf32, #tpu.memory_space<vmem>>, %arg6: memref<1x128xf32, #tpu.memory_space<vmem>>, %arg7: memref<16x128xf32, #tpu.memory_space<vmem>>, %arg8: memref<1x128xf32, #tpu.memory_space<vmem>>, %arg9: memref<16x128xf32, #tpu.memory_space<vmem>>) attributes {dimension_semantics = [#tpu.dimension_semantics<parallel>, #tpu.dimension_semantics<arbitrary>], iteration_bounds = array<i64: 1, 1>, scalar_prefetch = 0 : i64, scratch_operands = 1 : i64, tpu.core_type = #tpu.core_type<tc>, window_params = [{transform_indices = @transform_0, window_bounds = array<i64: 16, 32>}, {pipeline_mode = #tpu.pipeline_mode<synchronous>, transform_indices = @transform_1, window_bounds = array<i64: 32, 128>}, {pipeline_mode = #tpu.pipeline_mode<synchronous>, transform_indices = @transform_2, window_bounds = array<i64: 1, 128>}, {pipeline_mode = #tpu.pipeline_mode<synchronous>, transform_indices = @transform_3, window_bounds = array<i64: 128, 128>}, {pipeline_mode = #tpu.pipeline_mode<synchronous>, transform_indices = @transform_4, window_bounds = array<i64: 1, 128>}, {transform_indices = @transform_5, window_bounds = array<i64: 16, 128>}, {transform_indices = @transform_6, window_bounds = array<i64: 1, 128>}]} {
    %c0 = arith.constant 0 : index
    %c0_0 = arith.constant 0 : index
    %0 = vector.load %arg2[%c0, %c0_0] : memref<16x32xf32, #tpu.memory_space<vmem>>, vector<16x32xf32>
    %c0_1 = arith.constant 0 : index
    %c0_2 = arith.constant 0 : index
    %1 = vector.load %arg3[%c0_1, %c0_2] : memref<32x128xf32, #tpu.memory_space<vmem>>, vector<32x128xf32>
    %cst = arith.constant dense<0.000000e+00> : vector<16x128xf32>
    %2 = tpu.matmul %0, %1, %cst {dimension_numbers = #tpu.dot_dimension_numbers<[1], [0], [0], [1], [0, 0, 1, 1], [], []>} : vector<16x32xf32>, vector<32x128xf32>, vector<16x128xf32> -> vector<16x128xf32>
    %c0_3 = arith.constant 0 : index
    %c0_4 = arith.constant 0 : index
    %3 = vector.load %arg4[%c0_3, %c0_4] : memref<1x128xf32, #tpu.memory_space<vmem>>, vector<1x128xf32>
    %4 = vector.broadcast %3 : vector<1x128xf32> to vector<16x128xf32>
    %5 = arith.addf %2, %4 : vector<16x128xf32>
    %cst_5 = arith.constant 0.000000e+00 : f32
    %6 = vector.broadcast %cst_5 : f32 to vector<16x128xf32>
    %7 = arith.maximumf %5, %6 : vector<16x128xf32>
    %c0_6 = arith.constant 0 : index
    %c0_7 = arith.constant 0 : index
    %8 = vector.load %arg5[%c0_6, %c0_7] : memref<128x128xf32, #tpu.memory_space<vmem>>, vector<128x128xf32>
    %cst_8 = arith.constant dense<0.000000e+00> : vector<16x128xf32>
    %9 = tpu.matmul %7, %8, %cst_8 {dimension_numbers = #tpu.dot_dimension_numbers<[1], [0], [0], [1], [0, 0, 1, 1], [], []>} : vector<16x128xf32>, vector<128x128xf32>, vector<16x128xf32> -> vector<16x128xf32>
    %c0_9 = arith.constant 0 : index
    %c0_10 = arith.constant 0 : index
    %10 = vector.load %arg6[%c0_9, %c0_10] : memref<1x128xf32, #tpu.memory_space<vmem>>, vector<1x128xf32>
    %11 = vector.broadcast %10 : vector<1x128xf32> to vector<16x128xf32>
    %12 = arith.addf %9, %11 : vector<16x128xf32>
    %13 = arith.negf %12 : vector<16x128xf32>
    %14 = math.exp %13 : vector<16x128xf32>
    %cst_11 = arith.constant 1.000000e+00 : f32
    %15 = vector.broadcast %cst_11 : f32 to vector<16x128xf32>
    %16 = arith.addf %15, %14 : vector<16x128xf32>
    %17 = arith.divf %15, %16 : vector<16x128xf32>
    %18 = tpu.iota {dimensions = array<i32: 1>} : vector<16x128xi32>
    %cst_12 = arith.constant 5.000000e-01 : f32
    %19 = vector.broadcast %cst_12 : f32 to vector<16x128xf32>
    %20 = arith.cmpf ogt, %17, %19 : vector<16x128xf32>
    %c8_i32 = arith.constant 8 : i32
    %21 = vector.broadcast %c8_i32 : i32 to vector<16x128xi32>
    %22 = arith.cmpi slt, %18, %21 : vector<16x128xi32>
    %23 = arith.andi %20, %22 : vector<16x128xi1>
    %cst_13 = arith.constant 0.000000e+00 : f32
    %24 = vector.broadcast %cst_13 : f32 to vector<16x128xf32>
    %25 = arith.select %23, %17, %24 : vector<16x128xi1>, vector<16x128xf32>
    %false = arith.constant false
    %26 = vector.broadcast %false : i1 to vector<16x128xi1>
    %cst_14 = arith.constant dense<0xFF800000> : vector<16xf32>
    %27 = vector.multi_reduction <maximumf>, %25, %cst_14 [1] : vector<16x128xf32> to vector<16xf32>
    %28 = vector.shape_cast %27 : vector<16xf32> to vector<16x1xf32>
    %29 = vector.broadcast %28 : vector<16x1xf32> to vector<16x128xf32>
    %30 = arith.cmpf oeq, %25, %29 : vector<16x128xf32>
    %cst_15 = arith.constant 0.000000e+00 : f32
    %31 = vector.broadcast %cst_15 : f32 to vector<16x1xf32>
    %32 = arith.cmpf ogt, %28, %31 : vector<16x1xf32>
    %33 = vector.broadcast %32 : vector<16x1xi1> to vector<16x128xi1>
    %34 = arith.andi %30, %33 : vector<16x128xi1>
    %c128_i32 = arith.constant 128 : i32
    %35 = vector.broadcast %c128_i32 : i32 to vector<16x128xi32>
    %36 = arith.select %34, %18, %35 : vector<16x128xi1>, vector<16x128xi32>
    %cst_16 = arith.constant dense<2147483647> : vector<16xi32>
    %37 = vector.multi_reduction <minsi>, %36, %cst_16 [1] : vector<16x128xi32> to vector<16xi32>
    %38 = vector.shape_cast %37 : vector<16xi32> to vector<16x1xi32>
    %39 = vector.broadcast %38 : vector<16x1xi32> to vector<16x128xi32>
    %40 = arith.cmpi eq, %18, %39 : vector<16x128xi32>
    %41 = arith.andi %34, %40 : vector<16x128xi1>
    %42 = arith.ori %26, %41 : vector<16x128xi1>
    %cst_17 = arith.constant -1.000000e+00 : f32
    %43 = vector.broadcast %cst_17 : f32 to vector<16x128xf32>
    %44 = arith.select %41, %43, %25 : vector<16x128xi1>, vector<16x128xf32>
    %cst_18 = arith.constant dense<0xFF800000> : vector<16xf32>
    %45 = vector.multi_reduction <maximumf>, %44, %cst_18 [1] : vector<16x128xf32> to vector<16xf32>
    %46 = vector.shape_cast %45 : vector<16xf32> to vector<16x1xf32>
    %47 = vector.broadcast %46 : vector<16x1xf32> to vector<16x128xf32>
    %48 = arith.cmpf oeq, %44, %47 : vector<16x128xf32>
    %cst_19 = arith.constant 0.000000e+00 : f32
    %49 = vector.broadcast %cst_19 : f32 to vector<16x1xf32>
    %50 = arith.cmpf ogt, %46, %49 : vector<16x1xf32>
    %51 = vector.broadcast %50 : vector<16x1xi1> to vector<16x128xi1>
    %52 = arith.andi %48, %51 : vector<16x128xi1>
    %c128_i32_20 = arith.constant 128 : i32
    %53 = vector.broadcast %c128_i32_20 : i32 to vector<16x128xi32>
    %54 = arith.select %52, %18, %53 : vector<16x128xi1>, vector<16x128xi32>
    %cst_21 = arith.constant dense<2147483647> : vector<16xi32>
    %55 = vector.multi_reduction <minsi>, %54, %cst_21 [1] : vector<16x128xi32> to vector<16xi32>
    %56 = vector.shape_cast %55 : vector<16xi32> to vector<16x1xi32>
    %57 = vector.broadcast %56 : vector<16x1xi32> to vector<16x128xi32>
    %58 = arith.cmpi eq, %18, %57 : vector<16x128xi32>
    %59 = arith.andi %52, %58 : vector<16x128xi1>
    %60 = arith.ori %42, %59 : vector<16x128xi1>
    %61 = arith.extui %60 : vector<16x128xi1> to vector<16x128xi32>
    %62 = arith.sitofp %61 : vector<16x128xi32> to vector<16x128xf32>
    %cst_22 = arith.constant dense<0xFF800000> : vector<16xf32>
    %63 = vector.multi_reduction <maximumf>, %12, %cst_22 [1] : vector<16x128xf32> to vector<16xf32>
    %64 = vector.shape_cast %63 : vector<16xf32> to vector<16x1xf32>
    %65 = vector.broadcast %64 : vector<16x1xf32> to vector<16x128xf32>
    %66 = arith.subf %12, %65 : vector<16x128xf32>
    %67 = math.exp %66 : vector<16x128xf32>
    %cst_23 = arith.constant dense<0.000000e+00> : vector<16xf32>
    %68 = vector.multi_reduction <add>, %67, %cst_23 [1] : vector<16x128xf32> to vector<16xf32>
    %69 = vector.shape_cast %68 : vector<16xf32> to vector<16x1xf32>
    %70 = tpu.reciprocal %69 : vector<16x1xf32> -> vector<16x1xf32>
    %71 = vector.broadcast %70 : vector<16x1xf32> to vector<16x128xf32>
    %72 = arith.mulf %67, %71 : vector<16x128xf32>
    %73 = arith.mulf %17, %62 : vector<16x128xf32>
    %cst_24 = arith.constant dense<0.000000e+00> : vector<16xf32>
    %74 = vector.multi_reduction <add>, %73, %cst_24 [1] : vector<16x128xf32> to vector<16xf32>
    %75 = vector.shape_cast %74 : vector<16xf32> to vector<16x1xf32>
    %cst_25 = arith.constant 9.99999997E-7 : f32
    %76 = vector.broadcast %cst_25 : f32 to vector<16x1xf32>
    %77 = arith.addf %75, %76 : vector<16x1xf32>
    %78 = tpu.reciprocal %77 : vector<16x1xf32> -> vector<16x1xf32>
    %79 = vector.broadcast %78 : vector<16x1xf32> to vector<16x128xf32>
    %80 = arith.mulf %73, %79 : vector<16x128xf32>
    %81 = vector.extract_strided_slice %12 {offsets = [0, 0], sizes = [16, 8], strides = [1, 1]} : vector<16x128xf32> to vector<16x8xf32>
    %c0_26 = arith.constant 0 : index
    %c0_27 = arith.constant 0 : index
    %82 = vector.load %arg7[%c0_26, %c0_27] : memref<16x128xf32, #tpu.memory_space<vmem>>, vector<16x8xf32>
    tpu.vector_store %arg7[%c0_26, %c0_27], %81 {strides = array<i32>} : memref<16x128xf32, #tpu.memory_space<vmem>>, vector<16x8xf32>,
    %83 = vector.extract_strided_slice %80 {offsets = [0, 0], sizes = [16, 8], strides = [1, 1]} : vector<16x128xf32> to vector<16x8xf32>
    %c0_28 = arith.constant 0 : index
    %c8 = arith.constant 8 : index
    %84 = vector.load %arg7[%c0_28, %c8] : memref<16x128xf32, #tpu.memory_space<vmem>>, vector<16x8xf32>
    tpu.vector_store %arg7[%c0_28, %c8], %83 {strides = array<i32>} : memref<16x128xf32, #tpu.memory_space<vmem>>, vector<16x8xf32>,
    %cst_29 = arith.constant dense<0.000000e+00> : vector<128xf32>
    %85 = vector.multi_reduction <add>, %62, %cst_29 [0] : vector<16x128xf32> to vector<128xf32>
    %86 = vector.shape_cast %85 : vector<128xf32> to vector<1x128xf32>
    %cst_30 = arith.constant dense<0.000000e+00> : vector<128xf32>
    %87 = vector.multi_reduction <add>, %72, %cst_30 [0] : vector<16x128xf32> to vector<128xf32>
    %88 = vector.shape_cast %87 : vector<128xf32> to vector<1x128xf32>
    %89 = vector.extract_strided_slice %86 {offsets = [0, 0], sizes = [1, 8], strides = [1, 1]} : vector<1x128xf32> to vector<1x8xf32>
    %c0_31 = arith.constant 0 : index
    %c0_32 = arith.constant 0 : index
    %90 = vector.load %arg8[%c0_31, %c0_32] : memref<1x128xf32, #tpu.memory_space<vmem>>, vector<1x8xf32>
    tpu.vector_store %arg8[%c0_31, %c0_32], %89 {strides = array<i32>} : memref<1x128xf32, #tpu.memory_space<vmem>>, vector<1x8xf32>,
    %91 = vector.extract_strided_slice %88 {offsets = [0, 0], sizes = [1, 8], strides = [1, 1]} : vector<1x128xf32> to vector<1x8xf32>
    %c0_33 = arith.constant 0 : index
    %c8_34 = arith.constant 8 : index
    %92 = vector.load %arg8[%c0_33, %c8_34] : memref<1x128xf32, #tpu.memory_space<vmem>>, vector<1x8xf32>
    tpu.vector_store %arg8[%c0_33, %c8_34], %91 {strides = array<i32>} : memref<1x128xf32, #tpu.memory_space<vmem>>, vector<1x8xf32>,
    return
  }
  func.func @transform_0(%arg0: i32, %arg1: i32) -> (i32, i32) {
    %c0_i32 = arith.constant 0 : i32
    %c0_i32_0 = arith.constant 0 : i32
    return %arg0, %c0_i32 : i32, i32
  }
  func.func @transform_1(%arg0: i32, %arg1: i32) -> (i32, i32) {
    %c0_i32 = arith.constant 0 : i32
    %c0_i32_0 = arith.constant 0 : i32
    return %c0_i32, %arg1 : i32, i32
  }
  func.func @transform_2(%arg0: i32, %arg1: i32) -> (i32, i32) {
    %c0_i32 = arith.constant 0 : i32
    %c0_i32_0 = arith.constant 0 : i32
    return %c0_i32, %arg1 : i32, i32
  }
  func.func @transform_3(%arg0: i32, %arg1: i32) -> (i32, i32) {
    %c0_i32 = arith.constant 0 : i32
    %c0_i32_0 = arith.constant 0 : i32
    return %arg1, %c0_i32 : i32, i32
  }
  func.func @transform_4(%arg0: i32, %arg1: i32) -> (i32, i32) {
    %c0_i32 = arith.constant 0 : i32
    %c0_i32_0 = arith.constant 0 : i32
    %c0_i32_1 = arith.constant 0 : i32
    return %c0_i32, %c0_i32_0 : i32, i32
  }
  func.func @transform_5(%arg0: i32, %arg1: i32) -> (i32, i32) {
    %c0_i32 = arith.constant 0 : i32
    %c0_i32_0 = arith.constant 0 : i32
    return %arg0, %c0_i32 : i32, i32
  }
  func.func @transform_6(%arg0: i32, %arg1: i32) -> (i32, i32) {
    %c0_i32 = arith.constant 0 : i32
    %c0_i32_0 = arith.constant 0 : i32
    return %arg0, %c0_i32 : i32, i32
  }
}

module attributes {stable_mosaic.version = 11 : i64} {
  func.func @_router_kernel(%arg0: i32, %arg1: i32, %arg2: memref<16x32xf32, #tpu.memory_space<vmem>>, %arg3: memref<32x128xf32, #tpu.memory_space<vmem>>, %arg4: memref<1x128xf32, #tpu.memory_space<vmem>>, %arg5: memref<128x128xf32, #tpu.memory_space<vmem>>, %arg6: memref<1x128xf32, #tpu.memory_space<vmem>>, %arg7: memref<16x128xf32, #tpu.memory_space<vmem>>, %arg8: memref<1x128xf32, #tpu.memory_space<vmem>>, %arg9: memref<16x128xf32, #tpu.memory_space<vmem>>) attributes {dimension_semantics = [#tpu.dimension_semantics<parallel>, #tpu.dimension_semantics<arbitrary>], iteration_bounds = array<i64: 1, 1>, scalar_prefetch = 0 : i64, scratch_operands = 1 : i64, tpu.core_type = #tpu.core_type<tc>, window_params = [{transform_indices = @transform_0, window_bounds = array<i64: 16, 32>}, {transform_indices = @transform_1, window_bounds = array<i64: 32, 128>}, {transform_indices = @transform_2, window_bounds = array<i64: 1, 128>}, {transform_indices = @transform_3, window_bounds = array<i64: 128, 128>}, {pipeline_mode = #tpu.pipeline_mode<synchronous>, transform_indices = @transform_4, window_bounds = array<i64: 1, 128>}, {transform_indices = @transform_5, window_bounds = array<i64: 16, 128>}, {transform_indices = @transform_6, window_bounds = array<i64: 1, 128>}]} {
    %c0 = arith.constant 0 : index
    %c0_0 = arith.constant 0 : index
    %0 = vector.load %arg2[%c0, %c0_0] : memref<16x32xf32, #tpu.memory_space<vmem>>, vector<16x32xf32>
    %c0_1 = arith.constant 0 : index
    %c0_2 = arith.constant 0 : index
    %1 = vector.load %arg3[%c0_1, %c0_2] : memref<32x128xf32, #tpu.memory_space<vmem>>, vector<32x128xf32>
    %cst = arith.constant dense<0.000000e+00> : vector<16x128xf32>
    %2 = tpu.matmul %0, %1, %cst {dimension_numbers = #tpu.dot_dimension_numbers<[1], [0], [0], [1], [0, 0, 1, 1], [], []>} : vector<16x32xf32>, vector<32x128xf32>, vector<16x128xf32> -> vector<16x128xf32>
    %c0_3 = arith.constant 0 : index
    %c0_4 = arith.constant 0 : index
    %3 = vector.load %arg4[%c0_3, %c0_4] : memref<1x128xf32, #tpu.memory_space<vmem>>, vector<1x128xf32>
    %4 = vector.broadcast %3 : vector<1x128xf32> to vector<16x128xf32>
    %5 = arith.addf %2, %4 : vector<16x128xf32>
    %cst_5 = arith.constant 0.000000e+00 : f32
    %6 = vector.broadcast %cst_5 : f32 to vector<16x128xf32>
    %7 = arith.maximumf %5, %6 : vector<16x128xf32>
    %c0_6 = arith.constant 0 : index
    %c0_7 = arith.constant 0 : index
    %8 = vector.load %arg5[%c0_6, %c0_7] : memref<128x128xf32, #tpu.memory_space<vmem>>, vector<128x128xf32>
    %cst_8 = arith.constant dense<0.000000e+00> : vector<16x128xf32>
    %9 = tpu.matmul %7, %8, %cst_8 {dimension_numbers = #tpu.dot_dimension_numbers<[1], [0], [0], [1], [0, 0, 1, 1], [], []>} : vector<16x128xf32>, vector<128x128xf32>, vector<16x128xf32> -> vector<16x128xf32>
    %c0_9 = arith.constant 0 : index
    %c0_10 = arith.constant 0 : index
    %10 = vector.load %arg6[%c0_9, %c0_10] : memref<1x128xf32, #tpu.memory_space<vmem>>, vector<1x128xf32>
    %11 = vector.broadcast %10 : vector<1x128xf32> to vector<16x128xf32>
    %12 = arith.addf %9, %11 : vector<16x128xf32>
    %13 = arith.negf %12 : vector<16x128xf32>
    %14 = math.exp %13 : vector<16x128xf32>
    %cst_11 = arith.constant 1.000000e+00 : f32
    %15 = vector.broadcast %cst_11 : f32 to vector<16x128xf32>
    %16 = arith.addf %15, %14 : vector<16x128xf32>
    %17 = arith.divf %15, %16 : vector<16x128xf32>
    %18 = tpu.iota {dimensions = array<i32: 1>} : vector<16x128xi32>
    %cst_12 = arith.constant 5.000000e-01 : f32
    %19 = vector.broadcast %cst_12 : f32 to vector<16x128xf32>
    %20 = arith.cmpf ogt, %17, %19 : vector<16x128xf32>
    %c8_i32 = arith.constant 8 : i32
    %21 = vector.broadcast %c8_i32 : i32 to vector<16x128xi32>
    %22 = arith.cmpi slt, %18, %21 : vector<16x128xi32>
    %23 = arith.andi %20, %22 : vector<16x128xi1>
    %cst_13 = arith.constant 0.000000e+00 : f32
    %24 = vector.broadcast %cst_13 : f32 to vector<16x128xf32>
    %25 = arith.select %23, %17, %24 : vector<16x128xi1>, vector<16x128xf32>
    %false = arith.constant false
    %26 = vector.broadcast %false : i1 to vector<16x128xi1>
    %cst_14 = arith.constant dense<0xFF800000> : vector<16xf32>
    %27 = vector.multi_reduction <maximumf>, %25, %cst_14 [1] : vector<16x128xf32> to vector<16xf32>
    %28 = vector.shape_cast %27 : vector<16xf32> to vector<16x1xf32>
    %29 = vector.broadcast %28 : vector<16x1xf32> to vector<16x128xf32>
    %30 = arith.cmpf oeq, %25, %29 : vector<16x128xf32>
    %cst_15 = arith.constant 0.000000e+00 : f32
    %31 = vector.broadcast %cst_15 : f32 to vector<16x1xf32>
    %32 = arith.cmpf ogt, %28, %31 : vector<16x1xf32>
    %33 = vector.broadcast %32 : vector<16x1xi1> to vector<16x128xi1>
    %34 = arith.andi %30, %33 : vector<16x128xi1>
    %c128_i32 = arith.constant 128 : i32
    %35 = vector.broadcast %c128_i32 : i32 to vector<16x128xi32>
    %36 = arith.select %34, %18, %35 : vector<16x128xi1>, vector<16x128xi32>
    %cst_16 = arith.constant dense<2147483647> : vector<16xi32>
    %37 = vector.multi_reduction <minsi>, %36, %cst_16 [1] : vector<16x128xi32> to vector<16xi32>
    %38 = vector.shape_cast %37 : vector<16xi32> to vector<16x1xi32>
    %39 = vector.broadcast %38 : vector<16x1xi32> to vector<16x128xi32>
    %40 = arith.cmpi eq, %18, %39 : vector<16x128xi32>
    %41 = arith.andi %34, %40 : vector<16x128xi1>
    %42 = arith.ori %26, %41 : vector<16x128xi1>
    %cst_17 = arith.constant -1.000000e+00 : f32
    %43 = vector.broadcast %cst_17 : f32 to vector<16x128xf32>
    %44 = arith.select %41, %43, %25 : vector<16x128xi1>, vector<16x128xf32>
    %cst_18 = arith.constant dense<0xFF800000> : vector<16xf32>
    %45 = vector.multi_reduction <maximumf>, %44, %cst_18 [1] : vector<16x128xf32> to vector<16xf32>
    %46 = vector.shape_cast %45 : vector<16xf32> to vector<16x1xf32>
    %47 = vector.broadcast %46 : vector<16x1xf32> to vector<16x128xf32>
    %48 = arith.cmpf oeq, %44, %47 : vector<16x128xf32>
    %cst_19 = arith.constant 0.000000e+00 : f32
    %49 = vector.broadcast %cst_19 : f32 to vector<16x1xf32>
    %50 = arith.cmpf ogt, %46, %49 : vector<16x1xf32>
    %51 = vector.broadcast %50 : vector<16x1xi1> to vector<16x128xi1>
    %52 = arith.andi %48, %51 : vector<16x128xi1>
    %c128_i32_20 = arith.constant 128 : i32
    %53 = vector.broadcast %c128_i32_20 : i32 to vector<16x128xi32>
    %54 = arith.select %52, %18, %53 : vector<16x128xi1>, vector<16x128xi32>
    %cst_21 = arith.constant dense<2147483647> : vector<16xi32>
    %55 = vector.multi_reduction <minsi>, %54, %cst_21 [1] : vector<16x128xi32> to vector<16xi32>
    %56 = vector.shape_cast %55 : vector<16xi32> to vector<16x1xi32>
    %57 = vector.broadcast %56 : vector<16x1xi32> to vector<16x128xi32>
    %58 = arith.cmpi eq, %18, %57 : vector<16x128xi32>
    %59 = arith.andi %52, %58 : vector<16x128xi1>
    %60 = arith.ori %42, %59 : vector<16x128xi1>
    %61 = arith.extui %60 : vector<16x128xi1> to vector<16x128xi32>
    %62 = arith.sitofp %61 : vector<16x128xi32> to vector<16x128xf32>
    %cst_22 = arith.constant dense<0xFF800000> : vector<16xf32>
    %63 = vector.multi_reduction <maximumf>, %12, %cst_22 [1] : vector<16x128xf32> to vector<16xf32>
    %64 = vector.shape_cast %63 : vector<16xf32> to vector<16x1xf32>
    %65 = vector.broadcast %64 : vector<16x1xf32> to vector<16x128xf32>
    %66 = arith.subf %12, %65 : vector<16x128xf32>
    %67 = math.exp %66 : vector<16x128xf32>
    %cst_23 = arith.constant dense<0.000000e+00> : vector<16xf32>
    %68 = vector.multi_reduction <add>, %67, %cst_23 [1] : vector<16x128xf32> to vector<16xf32>
    %69 = vector.shape_cast %68 : vector<16xf32> to vector<16x1xf32>
    %70 = tpu.reciprocal %69 : vector<16x1xf32> -> vector<16x1xf32>
    %71 = vector.broadcast %70 : vector<16x1xf32> to vector<16x128xf32>
    %72 = arith.mulf %67, %71 : vector<16x128xf32>
    %73 = arith.mulf %17, %62 : vector<16x128xf32>
    %cst_24 = arith.constant dense<0.000000e+00> : vector<16xf32>
    %74 = vector.multi_reduction <add>, %73, %cst_24 [1] : vector<16x128xf32> to vector<16xf32>
    %75 = vector.shape_cast %74 : vector<16xf32> to vector<16x1xf32>
    %cst_25 = arith.constant 9.99999997E-7 : f32
    %76 = vector.broadcast %cst_25 : f32 to vector<16x1xf32>
    %77 = arith.addf %75, %76 : vector<16x1xf32>
    %78 = tpu.reciprocal %77 : vector<16x1xf32> -> vector<16x1xf32>
    %79 = vector.broadcast %78 : vector<16x1xf32> to vector<16x128xf32>
    %80 = arith.mulf %73, %79 : vector<16x128xf32>
    %81 = vector.extract_strided_slice %12 {offsets = [0, 0], sizes = [16, 8], strides = [1, 1]} : vector<16x128xf32> to vector<16x8xf32>
    %c0_26 = arith.constant 0 : index
    %c0_27 = arith.constant 0 : index
    %82 = vector.load %arg7[%c0_26, %c0_27] : memref<16x128xf32, #tpu.memory_space<vmem>>, vector<16x8xf32>
    tpu.vector_store %arg7[%c0_26, %c0_27], %81 {strides = array<i32>} : memref<16x128xf32, #tpu.memory_space<vmem>>, vector<16x8xf32>,
    %83 = vector.extract_strided_slice %80 {offsets = [0, 0], sizes = [16, 8], strides = [1, 1]} : vector<16x128xf32> to vector<16x8xf32>
    %c0_28 = arith.constant 0 : index
    %c8 = arith.constant 8 : index
    %84 = vector.load %arg7[%c0_28, %c8] : memref<16x128xf32, #tpu.memory_space<vmem>>, vector<16x8xf32>
    tpu.vector_store %arg7[%c0_28, %c8], %83 {strides = array<i32>} : memref<16x128xf32, #tpu.memory_space<vmem>>, vector<16x8xf32>,
    %cst_29 = arith.constant dense<0.000000e+00> : vector<128xf32>
    %85 = vector.multi_reduction <add>, %62, %cst_29 [0] : vector<16x128xf32> to vector<128xf32>
    %86 = vector.shape_cast %85 : vector<128xf32> to vector<1x128xf32>
    %cst_30 = arith.constant dense<0.000000e+00> : vector<128xf32>
    %87 = vector.multi_reduction <add>, %72, %cst_30 [0] : vector<16x128xf32> to vector<128xf32>
    %88 = vector.shape_cast %87 : vector<128xf32> to vector<1x128xf32>
    %89 = vector.extract_strided_slice %86 {offsets = [0, 0], sizes = [1, 8], strides = [1, 1]} : vector<1x128xf32> to vector<1x8xf32>
    %c0_31 = arith.constant 0 : index
    %c0_32 = arith.constant 0 : index
    %90 = vector.load %arg8[%c0_31, %c0_32] : memref<1x128xf32, #tpu.memory_space<vmem>>, vector<1x8xf32>
    tpu.vector_store %arg8[%c0_31, %c0_32], %89 {strides = array<i32>} : memref<1x128xf32, #tpu.memory_space<vmem>>, vector<1x8xf32>,
    %91 = vector.extract_strided_slice %88 {offsets = [0, 0], sizes = [1, 8], strides = [1, 1]} : vector<1x128xf32> to vector<1x8xf32>
    %c0_33 = arith.constant 0 : index
    %c8_34 = arith.constant 8 : index
    %92 = vector.load %arg8[%c0_33, %c8_34] : memref<1x128xf32, #tpu.memory_space<vmem>>, vector<1x8xf32>
    tpu.vector_store %arg8[%c0_33, %c8_34], %91 {strides = array<i32>} : memref<1x128xf32, #tpu.memory_space<vmem>>, vector<1x8xf32>,
    return
  }
  func.func @transform_0(%arg0: i32, %arg1: i32) -> (i32, i32) {
    %c0_i32 = arith.constant 0 : i32
    %c0_i32_0 = arith.constant 0 : i32
    return %arg0, %c0_i32 : i32, i32
  }
  func.func @transform_1(%arg0: i32, %arg1: i32) -> (i32, i32) {
    %c0_i32 = arith.constant 0 : i32
    %c0_i32_0 = arith.constant 0 : i32
    return %c0_i32, %arg1 : i32, i32
  }
  func.func @transform_2(%arg0: i32, %arg1: i32) -> (i32, i32) {
    %c0_i32 = arith.constant 0 : i32
    %c0_i32_0 = arith.constant 0 : i32
    return %c0_i32, %arg1 : i32, i32
  }
  func.func @transform_3(%arg0: i32, %arg1: i32) -> (i32, i32) {
    %c0_i32 = arith.constant 0 : i32
    %c0_i32_0 = arith.constant 0 : i32
    return %arg1, %c0_i32 : i32, i32
  }
  func.func @transform_4(%arg0: i32, %arg1: i32) -> (i32, i32) {
    %c0_i32 = arith.constant 0 : i32
    %c0_i32_0 = arith.constant 0 : i32
    %c0_i32_1 = arith.constant 0 : i32
    return %c0_i32, %c0_i32_0 : i32, i32
  }
  func.func @transform_5(%arg0: i32, %arg1: i32) -> (i32, i32) {
    %c0_i32 = arith.constant 0 : i32
    %c0_i32_0 = arith.constant 0 : i32
    return %arg0, %c0_i32 : i32, i32
  }
  func.func @transform_6(%arg0: i32, %arg1: i32) -> (i32, i32) {
    %c0_i32 = arith.constant 0 : i32
    %c0_i32_0 = arith.constant 0 : i32
    return %arg0, %c0_i32 : i32, i32
  }
}

</mosaic_0001>

<llo_original>
// kernel: tpu_custom_call.1
$region0: #{tpu_custom_call.1}
  #allocation0 [shape = 'u32[]', space=smem, size = 0x4, offset = 0x4, fixed_abs, tag = 'smem constant byte address 0x4 - core index']
  #allocation1 [shape = 'u32[144,128]{1,0:T(1,128)}', space=vmem, size = 0x12000, scoped, tag = 'internal scratch']
  #allocation2 [shape = 'f32[16,128]{1,0:T(8,128)}', space=vmem, size = 0x2000, scoped, tag = 'scratch operand']
  %s0 = inlined_call_operand.hbm [shape: f32[16,32], index: 0, kind: input, shape index: {}]
  %s1 = inlined_call_operand.hbm [shape: f32[32,128], index: 1, kind: input, shape index: {}]
  %s2 = inlined_call_operand.vmem [shape: f32[1,128], index: 2, kind: input, shape index: {}]
  %s3 = inlined_call_operand.hbm [shape: f32[128,128], index: 3, kind: input, shape index: {}]
  %s4 = inlined_call_operand.vmem [shape: f32[1,128], index: 4, kind: input, shape index: {}]
  %s5 = inlined_call_operand.hbm [shape: f32[16,128], index: 5, kind: output, shape index: {0}]
  %s6 = inlined_call_operand.hbm [shape: f32[1,128], index: 6, kind: output, shape index: {1}]
  %7 = xla_tuple %s5, %s6
  %s8 = sld [smem:[#allocation0]]
  $region50: #{tpu_custom_call.1} parent=0
    _
  %s10 = ssub.s32 1, %s8
  %s11 = scalar_select 0, %s10, %s8
  $region1: #{tpu_custom_call.1} parent=0
    #allocation3 [shape = 'u8[8192]{0}', space=vmem, size = 0x2000, scoped, tag = 'input window, operand 0, single buffered']
    #allocation4 [shape = 's32[1]{0}', space=sflag, size = 0x4, scoped, tag = 'scoped memory for tpu_custom_call.1']
    #allocation5 [shape = 's32[1]{0}', space=sflag, size = 0x4, scoped, tag = 'scoped memory for tpu_custom_call.1']
    #allocation6 [shape = 'u8[16384]{0}', space=vmem, size = 0x4000, scoped, tag = 'input window, operand 1, single buffered']
    #allocation7 [shape = 's32[1]{0}', space=sflag, size = 0x4, scoped, tag = 'scoped memory for tpu_custom_call.1']
    #allocation8 [shape = 'u8[65536]{0}', space=vmem, size = 0x10000, scoped, tag = 'input window, operand 3, single buffered']
    #allocation9 [shape = 'u8[8192]{0}', space=vmem, size = 0x2000, scoped, tag = 'output window, operand 0, single buffered']
    #allocation10 [shape = 'u8[512]{0}', space=vmem, size = 0x400, scoped, tag = 'output window, operand 1, single buffered']
    #allocation11 [shape = 's32[1]{0}', space=sflag, size = 0x4, scoped, tag = 'scoped memory for tpu_custom_call.1']
    %12 = vsyncpa [#allocation4], 0
    %13 = vsyncpa [#allocation7], 0
    %14 = vsyncpa [#allocation5], 0
    %15 = vsyncpa [#allocation11], 0
    // Predicated region
    $region2: #{tpu_custom_call.1} parent=1 // pred_check
      _
    $region3: #{tpu_custom_call.1} parent=1 // pred_check_branch
      %17 = sbr.rel (0) target = $region5
    $region4: #{tpu_custom_call.1} parent=1 // pred_region
      %s19 = ssub.s32 256, 256
      %20 = vsyncadd [#allocation4], %s19
      %s21 = sshll.u32 [#allocation3], 4
      %s22 = int_to_ptr.vmem [resolvable:$true] %s21
      %27 = dma.hbm_to_vmem [thread:$0]  %s0, 256, %s22, [#allocation4], 128, 128, 8
    $region5: #{tpu_custom_call.1} parent=1 // pred_fallthru
      _
    // Predicated region
    $region6: #{tpu_custom_call.1} parent=1 // pred_check
      _
    $region7: #{tpu_custom_call.1} parent=1 // pred_check_branch
      %29 = sbr.rel (0) target = $region9
    $region8: #{tpu_custom_call.1} parent=1 // pred_region
      %s31 = ssub.s32 512, 512
      %32 = vsyncadd [#allocation7], %s31
      %s33 = sshll.u32 [#allocation6], 4
      %s34 = int_to_ptr.vmem [resolvable:$true] %s33
      %39 = dma.hbm_to_vmem [thread:$0]  %s1, 512, %s34, [#allocation7], 128, 128, 8
    $region9: #{tpu_custom_call.1} parent=1 // pred_fallthru
      _
    // Predicated region
    $region10: #{tpu_custom_call.1} parent=1 // pred_check
      _
    $region11: #{tpu_custom_call.1} parent=1 // pred_check_branch
      %41 = sbr.rel (0) target = $region13
    $region12: #{tpu_custom_call.1} parent=1 // pred_region
      _
    $region13: #{tpu_custom_call.1} parent=1 // pred_fallthru
      _
    // Predicated region
    $region14: #{tpu_custom_call.1} parent=1 // pred_check
      _
    $region15: #{tpu_custom_call.1} parent=1 // pred_check_branch
      %43 = sbr.rel (0) target = $region17
    $region16: #{tpu_custom_call.1} parent=1 // pred_region
      %s45 = ssub.s32 2048, 2048
      %46 = vsyncadd [#allocation7], %s45
      %s47 = sshll.u32 [#allocation8], 4
      %s48 = int_to_ptr.vmem [resolvable:$true] %s47
      %53 = dma.hbm_to_vmem [thread:$0]  %s3, 2048, %s48, [#allocation7], 128, 128, 8
    $region17: #{tpu_custom_call.1} parent=1 // pred_fallthru
      _
    // Predicated region
    $region18: #{tpu_custom_call.1} parent=1 // pred_check
      _
    $region19: #{tpu_custom_call.1} parent=1 // pred_check_branch
      %55 = sbr.rel (0) target = $region21
    $region20: #{tpu_custom_call.1} parent=1 // pred_region
      _
    $region21: #{tpu_custom_call.1} parent=1 // pred_fallthru
      _
    // Predicated region
    $region22: #{tpu_custom_call.1} parent=1 // pred_check
      _
    $region23: #{tpu_custom_call.1} parent=1 // pred_check_branch
      %57 = sbr.rel (0) target = $region25
    $region24: #{tpu_custom_call.1} parent=1 // pred_region
      %58 = dma.done [#allocation4], 256
    $region25: #{tpu_custom_call.1} parent=1 // pred_fallthru
      _
    // Predicated region
    $region26: #{tpu_custom_call.1} parent=1 // pred_check
      _
    $region27: #{tpu_custom_call.1} parent=1 // pred_check_branch
      %60 = sbr.rel (0) target = $region29
    $region28: #{tpu_custom_call.1} parent=1 // pred_region
      %61 = dma.done [#allocation7], 512
    $region29: #{tpu_custom_call.1} parent=1 // pred_fallthru
      _
    // Predicated region
    $region30: #{tpu_custom_call.1} parent=1 // pred_check
      _
    $region31: #{tpu_custom_call.1} parent=1 // pred_check_branch
      %63 = sbr.rel (0) target = $region33
    $region32: #{tpu_custom_call.1} parent=1 // pred_region
      %64 = dma.done [#allocation7], 2048
    $region33: #{tpu_custom_call.1} parent=1 // pred_fallthru
      _
    %v65 = vld [vmem:[#allocation3] sm:$0xff]
    %v66 = vld [vmem:[#allocation3 + $0x8] sm:$0xff]
    %v67 = vld [vmem:[#allocation6] sm:$0xff]
    %v68 = vld [vmem:[#allocation6 + $0x8] sm:$0xff]
    %v69 = vld [vmem:[#allocation6 + $0x10] sm:$0xff]
    %v70 = vld [vmem:[#allocation6 + $0x18] sm:$0xff]
    %v71 = vld [vmem:[%s2] sm:$0x1]
    %v73 = vlaneseq
    %v74 = vshrl.u32 %v73, 7
    %v75 = vsub.s32 0, %v74
    %v76 = vrot.slane %v71, %v75
    %vm78 = vcmask 261120
    %v80 = vsel %vm78, %v65, 0
    %v83 = vsel %vm78, %v66, 0
    %85 = vmatprep.subr.mxu0 0.0
    %86 = vmatpush1.msra.mxu0 0.0
    %87 = vmatprep.subr.mxu0 0.0
    %88 = vmatpush1.msra.mxu0 0.0
    %89 = vmatprep.subr.mxu0 0.0
    %90 = vmatpush1.msra.mxu0 0.0
    %91 = vmatprep.subr.mxu0 0.0
    %92 = vmatpush1.msra.mxu0 0.0
    %93 = vmatprep.subr.mxu0 0.0
    %94 = vmatpush1.msra.mxu0 0.0
    %95 = vmatprep.subr.mxu0 0.0
    %96 = vmatpush1.msra.mxu0 0.0
    %97 = vmatprep.subr.mxu0 0.0
    %98 = vmatpush1.msra.mxu0 0.0
    %99 = vmatprep.subr.mxu0 0.0
    %100 = vmatpush1.msra.mxu0 0.0
    %101 = vmatprep.subr.mxu0 0.0
    %102 = vmatpush1.msra.mxu0 0.0
    %103 = vmatprep.subr.mxu0 0.0
    %104 = vmatpush1.msra.mxu0 0.0
    %105 = vmatprep.subr.mxu0 0.0
    %106 = vmatpush1.msra.mxu0 0.0
    %107 = vmatprep.subr.mxu0 0.0
    %108 = vmatpush1.msra.mxu0 0.0
    %109 = vmatprep.subr.mxu0 0.0
    %110 = vmatpush1.msra.mxu0 %v70
    %111 = vmatprep.subr.mxu0 0.0
    %112 = vmatpush1.msra.mxu0 %v69
    %113 = vmatprep.subr.mxu0 0.0
    %114 = vmatpush1.msra.mxu0 %v68
    %115 = vmatprep.subr.mxu0 0.0
    %116 = vmatpush1.msra.mxu0 %v67
    %117 = vmatprep.subr.mxu0 0.0
    %118 = vmatpush2.msra.mxu0 0.0
    %119 = vmatprep.subr.mxu0 0.0
    %120 = vmatpush2.msra.mxu0 0.0
    %121 = vmatprep.subr.mxu0 0.0
    %122 = vmatpush2.msra.mxu0 0.0
    %123 = vmatprep.subr.mxu0 0.0
    %124 = vmatpush2.msra.mxu0 0.0
    %125 = vmatprep.subr.mxu0 0.0
    %126 = vmatpush2.msra.mxu0 0.0
    %127 = vmatprep.subr.mxu0 0.0
    %128 = vmatpush2.msra.mxu0 0.0
    %129 = vmatprep.subr.mxu0 0.0
    %130 = vmatpush2.msra.mxu0 0.0
    %131 = vmatprep.subr.mxu0 0.0
    %132 = vmatpush2.msra.mxu0 0.0
    %133 = vmatprep.subr.mxu0 0.0
    %134 = vmatpush2.msra.mxu0 0.0
    %135 = vmatprep.subr.mxu0 0.0
    %136 = vmatpush2.msra.mxu0 0.0
    %137 = vmatprep.subr.mxu0 0.0
    %138 = vmatpush2.msra.mxu0 0.0
    %139 = vmatprep.subr.mxu0 0.0
    %140 = vmatpush2.msra.mxu0 0.0
    %141 = vmatprep.subr.mxu0 0.0
    %142 = vmatpush2.msra.mxu0 0.0
    %143 = vmatprep.subr.mxu0 0.0
    %144 = vmatpush2.msra.mxu0 0.0
    %145 = vmatprep.subr.mxu0 0.0
    %146 = vmatpush2.msra.mxu0 0.0
    %147 = vmatprep.subr.mxu0 0.0
    %148 = vmatpush2.msra.mxu0 0.0
    %149 = vmatprep.mubr.f32.mxu0 0.0
    %150 = vmatmul.mubr.f32.gmra.mxu0 %v80
    %v151 = vpop.f32.mrf.mxu0
    %v152 = vadd.f32 %v76, %v151
    %v153 = vpop.f32.mrf.mxu0
    %154 = vmatprep.mubr.f32.mxu0 0.0
    %155 = vmatmul.mubr.f32.gmra.mxu0 %v83
    %v156 = vpop.f32.mrf.mxu0
    %v157 = vadd.f32 %v76, %v156
    %v158 = vpop.f32.mrf.mxu0
    %159 = vdwg.mxu0
    %v160 = vmax.f32 %v152, 0.0
    %v161 = vmax.f32 %v157, 0.0
    %v162 = vld [vmem:[#allocation8] sm:$0xff]
    %v163 = vld [vmem:[#allocation8 + $0x8] sm:$0xff]
    %v164 = vld [vmem:[#allocation8 + $0x10] sm:$0xff]
    %v165 = vld [vmem:[#allocation8 + $0x18] sm:$0xff]
    %v166 = vld [vmem:[#allocation8 + $0x20] sm:$0xff]
    %v167 = vld [vmem:[#allocation8 + $0x28] sm:$0xff]
    %v168 = vld [vmem:[#allocation8 + $0x30] sm:$0xff]
    %v169 = vld [vmem:[#allocation8 + $0x38] sm:$0xff]
    %v170 = vld [vmem:[#allocation8 + $0x40] sm:$0xff]
    %v171 = vld [vmem:[#allocation8 + $0x48] sm:$0xff]
    %v172 = vld [vmem:[#allocation8 + $0x50] sm:$0xff]
    %v173 = vld [vmem:[#allocation8 + $0x58] sm:$0xff]
    %v174 = vld [vmem:[#allocation8 + $0x60] sm:$0xff]
    %v175 = vld [vmem:[#allocation8 + $0x68] sm:$0xff]
    %v176 = vld [vmem:[#allocation8 + $0x70] sm:$0xff]
    %v177 = vld [vmem:[#allocation8 + $0x78] sm:$0xff]
    %v178 = vld [vmem:[%s4] sm:$0x1]
    %v180 = vlaneseq
    %v181 = vshrl.u32 %v180, 7
    %v182 = vsub.s32 0, %v181
    %v183 = vrot.slane %v178, %v182
    %185 = vmatprep.subr.mxu0 0.0
    %186 = vmatpush1.msra.mxu0 %v177
    %187 = vmatprep.subr.mxu0 0.0
    %188 = vmatpush1.msra.mxu0 %v176
    %189 = vmatprep.subr.mxu0 0.0
    %190 = vmatpush1.msra.mxu0 %v175
    %191 = vmatprep.subr.mxu0 0.0
    %192 = vmatpush1.msra.mxu0 %v174
    %193 = vmatprep.subr.mxu0 0.0
    %194 = vmatpush1.msra.mxu0 %v173
    %195 = vmatprep.subr.mxu0 0.0
    %196 = vmatpush1.msra.mxu0 %v172
    %197 = vmatprep.subr.mxu0 0.0
    %198 = vmatpush1.msra.mxu0 %v171
    %199 = vmatprep.subr.mxu0 0.0
    %200 = vmatpush1.msra.mxu0 %v170
    %201 = vmatprep.subr.mxu0 0.0
    %202 = vmatpush1.msra.mxu0 %v169
    %203 = vmatprep.subr.mxu0 0.0
    %204 = vmatpush1.msra.mxu0 %v168
    %205 = vmatprep.subr.mxu0 0.0
    %206 = vmatpush1.msra.mxu0 %v167
    %207 = vmatprep.subr.mxu0 0.0
    %208 = vmatpush1.msra.mxu0 %v166
    %209 = vmatprep.subr.mxu0 0.0
    %210 = vmatpush1.msra.mxu0 %v165
    %211 = vmatprep.subr.mxu0 0.0
    %212 = vmatpush1.msra.mxu0 %v164
    %213 = vmatprep.subr.mxu0 0.0
    %214 = vmatpush1.msra.mxu0 %v163
    %215 = vmatprep.subr.mxu0 0.0
    %216 = vmatpush1.msra.mxu0 %v162
    %217 = vmatprep.subr.mxu0 0.0
    %218 = vmatpush2.msra.mxu0 0.0
    %219 = vmatprep.subr.mxu0 0.0
    %220 = vmatpush2.msra.mxu0 0.0
    %221 = vmatprep.subr.mxu0 0.0
    %222 = vmatpush2.msra.mxu0 0.0
    %223 = vmatprep.subr.mxu0 0.0
    %224 = vmatpush2.msra.mxu0 0.0
    %225 = vmatprep.subr.mxu0 0.0
    %226 = vmatpush2.msra.mxu0 0.0
    %227 = vmatprep.subr.mxu0 0.0
    %228 = vmatpush2.msra.mxu0 0.0
    %229 = vmatprep.subr.mxu0 0.0
    %230 = vmatpush2.msra.mxu0 0.0
    %231 = vmatprep.subr.mxu0 0.0
    %232 = vmatpush2.msra.mxu0 0.0
    %233 = vmatprep.subr.mxu0 0.0
    %234 = vmatpush2.msra.mxu0 0.0
    %235 = vmatprep.subr.mxu0 0.0
    %236 = vmatpush2.msra.mxu0 0.0
    %237 = vmatprep.subr.mxu0 0.0
    %238 = vmatpush2.msra.mxu0 0.0
    %239 = vmatprep.subr.mxu0 0.0
    %240 = vmatpush2.msra.mxu0 0.0
    %241 = vmatprep.subr.mxu0 0.0
    %242 = vmatpush2.msra.mxu0 0.0
    %243 = vmatprep.subr.mxu0 0.0
    %244 = vmatpush2.msra.mxu0 0.0
    %245 = vmatprep.subr.mxu0 0.0
    %246 = vmatpush2.msra.mxu0 0.0
    %247 = vmatprep.subr.mxu0 0.0
    %248 = vmatpush2.msra.mxu0 0.0
    %249 = vmatprep.mubr.f32.mxu0 0.0
    %250 = vmatmul.mubr.f32.gmra.mxu0 %v160
    %v251 = vpop.f32.mrf.mxu0
    %v252 = vadd.f32 %v183, %v251
    %v253 = vpop.f32.mrf.mxu0
    %254 = vmatprep.mubr.f32.mxu0 0.0
    %255 = vmatmul.mubr.f32.gmra.mxu0 %v161
    %v256 = vpop.f32.mrf.mxu0
    %v257 = vadd.f32 %v183, %v256
    %v258 = vpop.f32.mrf.mxu0
    %259 = vdwg.mxu0
    %v260 = vxor.u32 %v252, 2147483648
    %v261 = vxor.u32 %v257, 2147483648
    %v262 = vmul.f32 %v260, 1.442695
    %v263 = vpow.pop %v262
    %v264 = vmul.f32 %v261, 1.442695
    %v265 = vpow.pop %v264
    %v266 = vadd.f32 %v263, 1.0
    %v267 = vadd.f32 %v265, 1.0
    %v268 = vrcp.pop %v266
    %v269 = vmul.f32 1.0, %v268
    %v270 = vrcp.pop %v267
    %v271 = vmul.f32 1.0, %v270
    %v272 = vlaneseq
    %v273 = vand.u32 %v272, 127
    %vm274 = vcmp.gt.f32.partialorder %v269, 0.5
    %vm275 = vcmp.gt.f32.partialorder %v271, 0.5
    %vm276 = vcmp.lt.s32.totalorder %v273, 8
    %vm277 = vmand %vm274, %vm276
    %vm278 = vmand %vm275, %vm276
    %v279 = vsel %vm277, %v269, 0.0
    %v280 = vsel %vm278, %v271, 0.0
    %281 = vmax.xlane.f32.xlu0 %v279
    %v282 = vpop.xlane.xlu0 %281
    %283 = vmax.xlane.f32.xlu0 %v280
    %v284 = vpop.xlane.xlu0 %283
    %vm285 = vcmp.eq.f32.partialorder %v279, %v282
    %vm286 = vcmp.eq.f32.partialorder %v280, %v284
    %vm287 = vcmp.gt.f32.partialorder %v282, 0.0
    %vm288 = vcmp.gt.f32.partialorder %v284, 0.0
    %v289 = vsel %vm287, 1, 0
    %v290 = vsel %vm288, 1, 0
    %vm291 = vcmp.eq.s32.totalorder %v289, 1
    %vm292 = vcmp.eq.s32.totalorder %v290, 1
    %vm293 = vmand %vm285, %vm291
    %vm294 = vmand %vm286, %vm292
    %v295 = vsel %vm293, %v273, 128
    %v296 = vsel %vm294, %v273, 128
    %v297 = vand.u32 %v295, 65535
    %v298 = vshra.s32 %v295, 16
    %v299 = vcvt.s32.f32 %v297
    %v300 = vcvt.s32.f32 %v298
    %301 = vmin.xlane.f32.xlu0 %v300
    %v302 = vpop.xlane.xlu0 %301
    %vm303 = vcmp.eq.f32.partialorder %v300, %v302
    %v304 = vsel %vm303, %v299, inf
    %305 = vmin.xlane.f32.xlu0 %v304
    %v306 = vpop.xlane.xlu0 %305
    %v307 = vcvt.f32.s32 %v306
    %v308 = vcvt.f32.s32 %v302
    %v309 = vshll.u32 %v308, 16
    %v310 = vadd.s32 %v309, %v307
    %v311 = vand.u32 %v296, 65535
    %v312 = vshra.s32 %v296, 16
    %v313 = vcvt.s32.f32 %v311
    %v314 = vcvt.s32.f32 %v312
    %315 = vmin.xlane.f32.xlu0 %v314
    %v316 = vpop.xlane.xlu0 %315
    %vm317 = vcmp.eq.f32.partialorder %v314, %v316
    %v318 = vsel %vm317, %v313, inf
    %319 = vmin.xlane.f32.xlu0 %v318
    %v320 = vpop.xlane.xlu0 %319
    %v321 = vcvt.f32.s32 %v320
    %v322 = vcvt.f32.s32 %v316
    %v323 = vshll.u32 %v322, 16
    %v324 = vadd.s32 %v323, %v321
    %vm325 = vcmp.eq.s32.totalorder %v273, %v310
    %vm326 = vcmp.eq.s32.totalorder %v273, %v324
    %vm327 = vmand %vm293, %vm325
    %vm328 = vmand %vm294, %vm326
    %v329 = vsel %vm327, -1.0, %v279
    %v330 = vsel %vm328, -1.0, %v280
    %331 = vmax.xlane.f32.xlu0 %v329
    %v332 = vpop.xlane.xlu0 %331
    %333 = vmax.xlane.f32.xlu0 %v330
    %v334 = vpop.xlane.xlu0 %333
    %vm335 = vcmp.eq.f32.partialorder %v329, %v332
    %vm336 = vcmp.eq.f32.partialorder %v330, %v334
    %vm337 = vcmp.gt.f32.partialorder %v332, 0.0
    %vm338 = vcmp.gt.f32.partialorder %v334, 0.0
    %v339 = vsel %vm337, 1, 0
    %v340 = vsel %vm338, 1, 0
    %vm341 = vcmp.eq.s32.totalorder %v339, 1
    %vm342 = vcmp.eq.s32.totalorder %v340, 1
    %vm343 = vmand %vm335, %vm341
    %vm344 = vmand %vm336, %vm342
    %v345 = vsel %vm343, %v273, 128
    %v346 = vsel %vm344, %v273, 128
    %v347 = vand.u32 %v345, 65535
    %v348 = vshra.s32 %v345, 16
    %v349 = vcvt.s32.f32 %v347
    %v350 = vcvt.s32.f32 %v348
    %351 = vmin.xlane.f32.xlu0 %v350
    %v352 = vpop.xlane.xlu0 %351
    %vm353 = vcmp.eq.f32.partialorder %v350, %v352
    %v354 = vsel %vm353, %v349, inf
    %355 = vmin.xlane.f32.xlu0 %v354
    %v356 = vpop.xlane.xlu0 %355
    %v357 = vcvt.f32.s32 %v356
    %v358 = vcvt.f32.s32 %v352
    %v359 = vshll.u32 %v358, 16
    %v360 = vadd.s32 %v359, %v357
    %v361 = vand.u32 %v346, 65535
    %v362 = vshra.s32 %v346, 16
    %v363 = vcvt.s32.f32 %v361
    %v364 = vcvt.s32.f32 %v362
    %365 = vmin.xlane.f32.xlu0 %v364
    %v366 = vpop.xlane.xlu0 %365
    %vm367 = vcmp.eq.f32.partialorder %v364, %v366
    %v368 = vsel %vm367, %v363, inf
    %369 = vmin.xlane.f32.xlu0 %v368
    %v370 = vpop.xlane.xlu0 %369
    %v371 = vcvt.f32.s32 %v370
    %v372 = vcvt.f32.s32 %v366
    %v373 = vshll.u32 %v372, 16
    %v374 = vadd.s32 %v373, %v371
    %vm375 = vcmp.eq.s32.totalorder %v273, %v360
    %vm376 = vcmp.eq.s32.totalorder %v273, %v374
    %vm377 = vmand %vm343, %vm375
    %vm378 = vmand %vm344, %vm376
    %vm379 = vmor %vm327, %vm377
    %vm380 = vmor %vm328, %vm378
    %v381 = vsel %vm379, 1, 0
    %v382 = vsel %vm380, 1, 0
    %v383 = vcvt.s32.f32 %v381
    %v384 = vcvt.s32.f32 %v382
    %385 = vmax.xlane.f32.xlu0 %v252
    %v386 = vpop.xlane.xlu0 %385
    %387 = vmax.xlane.f32.xlu0 %v257
    %v388 = vpop.xlane.xlu0 %387
    %v389 = vsub.f32 %v252, %v386
    %v390 = vsub.f32 %v257, %v388
    %v391 = vmul.f32 %v389, 1.442695
    %v392 = vpow.pop %v391
    %v393 = vmul.f32 %v390, 1.442695
    %v394 = vpow.pop %v393
    %395 = vadd.xlane.f32.xlu0 %v392
    %v396 = vpop.xlane.xlu0 %395
    %397 = vadd.xlane.f32.xlu0 %v394
    %v398 = vpop.xlane.xlu0 %397
    %v399 = vrcp.pop %v396
    %v400 = vrcp.pop %v398
    %v401 = vmul.f32 %v392, %v399
    %v402 = vmul.f32 %v394, %v400
    %v403 = vmul.f32 %v269, %v383
    %v404 = vmul.f32 %v271, %v384
    %405 = vadd.xlane.f32.xlu0 %v403
    %v406 = vpop.xlane.xlu0 %405
    %407 = vadd.xlane.f32.xlu0 %v404
    %v408 = vpop.xlane.xlu0 %407
    %v409 = vadd.f32 %v406, 1e-06
    %v410 = vadd.f32 %v408, 1e-06
    %v411 = vrcp.pop %v409
    %v412 = vrcp.pop %v410
    %v413 = vmul.f32 %v403, %v411
    %v414 = vmul.f32 %v404, %v412
    %vm415 = vcmask 64512
    %416 = vst.msk [vmem:[#allocation9] sm:$0xff] %vm415, %v252
    %417 = vst.msk [vmem:[#allocation9 + $0x8] sm:$0xff] %vm415, %v257
    %420 = vrot.lane.b32.xlu0 %v413, 8
    %v421 = vpop.permute.xlu0 %420
    %422 = vrot.lane.b32.xlu0 %v414, 8
    %v423 = vpop.permute.xlu0 %422
    %vm426 = vcmask 130112
    %427 = vst.msk [vmem:[#allocation9] sm:$0xff] %vm426, %v421
    %428 = vst.msk [vmem:[#allocation9 + $0x8] sm:$0xff] %vm426, %v423
    %v429 = vadd.f32 %v383, %v384
    %v430 = vrot.slane %v429, 4
    %v431 = vadd.f32 %v429, %v430
    %v432 = vrot.slane %v431, 2
    %v433 = vadd.f32 %v431, %v432
    %v434 = vrot.slane %v433, 1
    %v435 = vadd.f32 %v433, %v434
    %v436 = vadd.f32 %v401, %v402
    %v437 = vrot.slane %v436, 4
    %v438 = vadd.f32 %v436, %v437
    %v439 = vrot.slane %v438, 2
    %v440 = vadd.f32 %v438, %v439
    %v441 = vrot.slane %v440, 1
    %v442 = vadd.f32 %v440, %v441
    %vm443 = vcmask 57344
    %444 = vst.msk [vmem:[#allocation10] sm:$0x1] %vm443, %v435
    %446 = vrot.lane.b32.xlu0 %v442, 8
    %v447 = vpop.permute.xlu0 %446
    %vm449 = vcmask 122944
    %450 = vst.msk [vmem:[#allocation10] sm:$0x1] %vm449, %v447
    // Predicated region
    $region34: #{tpu_custom_call.1} parent=1 // pred_check
      _
    $region35: #{tpu_custom_call.1} parent=1 // pred_check_branch
      %452 = sbr.rel (0) target = $region37
    $region36: #{tpu_custom_call.1} parent=1 // pred_region
      %s454 = ssub.s32 256, 256
      %455 = vsyncadd [#allocation5], %s454
      %s456 = sshll.u32 [#allocation9], 4
      %s457 = int_to_ptr.vmem [resolvable:$true] %s456
      %462 = dma.vmem_to_hbm [thread:$0]  %s457, 256, %s5, [#allocation5], 128, 128, 8
    $region37: #{tpu_custom_call.1} parent=1 // pred_fallthru
      _
    // Predicated region
    $region38: #{tpu_custom_call.1} parent=1 // pred_check
      _
    $region39: #{tpu_custom_call.1} parent=1 // pred_check_branch
      %464 = sbr.rel (0) target = $region41
    $region40: #{tpu_custom_call.1} parent=1 // pred_region
      %s466 = ssub.s32 16, 16
      %467 = vsyncadd [#allocation11], %s466
      %s469 = sshll.u32 [#allocation10], 4
      %s470 = int_to_ptr.vmem [resolvable:$true] %s469
      %472 = dma.vmem_to_hbm [thread:$0]  %s470, 16, %s6, [#allocation11]
    $region41: #{tpu_custom_call.1} parent=1 // pred_fallthru
      _
    // Predicated region
    $region42: #{tpu_custom_call.1} parent=1 // pred_check
      _
    $region43: #{tpu_custom_call.1} parent=1 // pred_check_branch
      %474 = sbr.rel (0) target = $region45
    $region44: #{tpu_custom_call.1} parent=1 // pred_region
      %475 = dma.done [#allocation5], 256
    $region45: #{tpu_custom_call.1} parent=1 // pred_fallthru
      _
    // Predicated region
    $region46: #{tpu_custom_call.1} parent=1 // pred_check
      _
    $region47: #{tpu_custom_call.1} parent=1 // pred_check_branch
      %477 = sbr.rel (0) target = $region49
    $region48: #{tpu_custom_call.1} parent=1 // pred_region
      %478 = dma.done [#allocation11], 16
    $region49: #{tpu_custom_call.1} parent=1 // pred_fallthru
      _
    %479 = vsyncpa [#allocation4], 1
    %480 = vsyncpa [#allocation7], 1
    %481 = vsyncpa [#allocation5], 1
    %482 = vsyncpa [#allocation11], 1

// kernel: tpu_custom_call.1
$region0: #{tpu_custom_call.1}
  #allocation0 [shape = 'u32[]', space=smem, size = 0x4, offset = 0x4, fixed_abs, tag = 'smem constant byte address 0x4 - core index']
  #allocation1 [shape = 'u32[144,128]{1,0:T(1,128)}', space=vmem, size = 0x12000, scoped, tag = 'internal scratch']
  #allocation2 [shape = 'f32[16,128]{1,0:T(8,128)}', space=vmem, size = 0x2000, scoped, tag = 'scratch operand']
  %s0 = inlined_call_operand.hbm [shape: f32[16,32], index: 0, kind: input, shape index: {}]
  %s1 = inlined_call_operand.hbm [shape: f32[32,128], index: 1, kind: input, shape index: {}]
  %s2 = inlined_call_operand.vmem [shape: f32[1,128], index: 2, kind: input, shape index: {}]
  %s3 = inlined_call_operand.hbm [shape: f32[128,128], index: 3, kind: input, shape index: {}]
  %s4 = inlined_call_operand.vmem [shape: f32[1,128], index: 4, kind: input, shape index: {}]
  %s5 = inlined_call_operand.hbm [shape: f32[16,128], index: 5, kind: output, shape index: {0}]
  %s6 = inlined_call_operand.hbm [shape: f32[1,128], index: 6, kind: output, shape index: {1}]
  %7 = xla_tuple %s5, %s6
  %s8 = sld [smem:[#allocation0]]
  $region50: #{tpu_custom_call.1} parent=0
    _
  %s10 = ssub.s32 1, %s8
  %s11 = scalar_select 0, %s10, %s8
  $region1: #{tpu_custom_call.1} parent=0
    #allocation3 [shape = 'u8[8192]{0}', space=vmem, size = 0x2000, scoped, tag = 'input window, operand 0, single buffered']
    #allocation4 [shape = 's32[1]{0}', space=sflag, size = 0x4, scoped, tag = 'scoped memory for tpu_custom_call.1']
    #allocation5 [shape = 's32[1]{0}', space=sflag, size = 0x4, scoped, tag = 'scoped memory for tpu_custom_call.1']
    #allocation6 [shape = 'u8[16384]{0}', space=vmem, size = 0x4000, scoped, tag = 'input window, operand 1, single buffered']
    #allocation7 [shape = 's32[1]{0}', space=sflag, size = 0x4, scoped, tag = 'scoped memory for tpu_custom_call.1']
    #allocation8 [shape = 'u8[65536]{0}', space=vmem, size = 0x10000, scoped, tag = 'input window, operand 3, single buffered']
    #allocation9 [shape = 'u8[8192]{0}', space=vmem, size = 0x2000, scoped, tag = 'output window, operand 0, single buffered']
    #allocation10 [shape = 'u8[512]{0}', space=vmem, size = 0x400, scoped, tag = 'output window, operand 1, single buffered']
    #allocation11 [shape = 's32[1]{0}', space=sflag, size = 0x4, scoped, tag = 'scoped memory for tpu_custom_call.1']
    %12 = vsyncpa [#allocation4], 0
    %13 = vsyncpa [#allocation7], 0
    %14 = vsyncpa [#allocation5], 0
    %15 = vsyncpa [#allocation11], 0
    // Predicated region
    $region2: #{tpu_custom_call.1} parent=1 // pred_check
      _
    $region3: #{tpu_custom_call.1} parent=1 // pred_check_branch
      %17 = sbr.rel (0) target = $region5
    $region4: #{tpu_custom_call.1} parent=1 // pred_region
      %s19 = ssub.s32 256, 256
      %20 = vsyncadd [#allocation4], %s19
      %s21 = sshll.u32 [#allocation3], 4
      %s22 = int_to_ptr.vmem [resolvable:$true] %s21
      %27 = dma.hbm_to_vmem [thread:$0]  %s0, 256, %s22, [#allocation4], 128, 128, 8
    $region5: #{tpu_custom_call.1} parent=1 // pred_fallthru
      _
    // Predicated region
    $region6: #{tpu_custom_call.1} parent=1 // pred_check
      _
    $region7: #{tpu_custom_call.1} parent=1 // pred_check_branch
      %29 = sbr.rel (0) target = $region9
    $region8: #{tpu_custom_call.1} parent=1 // pred_region
      %s31 = ssub.s32 512, 512
      %32 = vsyncadd [#allocation7], %s31
      %s33 = sshll.u32 [#allocation6], 4
      %s34 = int_to_ptr.vmem [resolvable:$true] %s33
      %39 = dma.hbm_to_vmem [thread:$0]  %s1, 512, %s34, [#allocation7], 128, 128, 8
    $region9: #{tpu_custom_call.1} parent=1 // pred_fallthru
      _
    // Predicated region
    $region10: #{tpu_custom_call.1} parent=1 // pred_check
      _
    $region11: #{tpu_custom_call.1} parent=1 // pred_check_branch
      %41 = sbr.rel (0) target = $region13
    $region12: #{tpu_custom_call.1} parent=1 // pred_region
      _
    $region13: #{tpu_custom_call.1} parent=1 // pred_fallthru
      _
    // Predicated region
    $region14: #{tpu_custom_call.1} parent=1 // pred_check
      _
    $region15: #{tpu_custom_call.1} parent=1 // pred_check_branch
      %43 = sbr.rel (0) target = $region17
    $region16: #{tpu_custom_call.1} parent=1 // pred_region
      %s45 = ssub.s32 2048, 2048
      %46 = vsyncadd [#allocation7], %s45
      %s47 = sshll.u32 [#allocation8], 4
      %s48 = int_to_ptr.vmem [resolvable:$true] %s47
      %53 = dma.hbm_to_vmem [thread:$0]  %s3, 2048, %s48, [#allocation7], 128, 128, 8
    $region17: #{tpu_custom_call.1} parent=1 // pred_fallthru
      _
    // Predicated region
    $region18: #{tpu_custom_call.1} parent=1 // pred_check
      _
    $region19: #{tpu_custom_call.1} parent=1 // pred_check_branch
      %55 = sbr.rel (0) target = $region21
    $region20: #{tpu_custom_call.1} parent=1 // pred_region
      _
    $region21: #{tpu_custom_call.1} parent=1 // pred_fallthru
      _
    // Predicated region
    $region22: #{tpu_custom_call.1} parent=1 // pred_check
      _
    $region23: #{tpu_custom_call.1} parent=1 // pred_check_branch
      %57 = sbr.rel (0) target = $region25
    $region24: #{tpu_custom_call.1} parent=1 // pred_region
      %58 = dma.done [#allocation4], 256
    $region25: #{tpu_custom_call.1} parent=1 // pred_fallthru
      _
    // Predicated region
    $region26: #{tpu_custom_call.1} parent=1 // pred_check
      _
    $region27: #{tpu_custom_call.1} parent=1 // pred_check_branch
      %60 = sbr.rel (0) target = $region29
    $region28: #{tpu_custom_call.1} parent=1 // pred_region
      %61 = dma.done [#allocation7], 512
    $region29: #{tpu_custom_call.1} parent=1 // pred_fallthru
      _
    // Predicated region
    $region30: #{tpu_custom_call.1} parent=1 // pred_check
      _
    $region31: #{tpu_custom_call.1} parent=1 // pred_check_branch
      %63 = sbr.rel (0) target = $region33
    $region32: #{tpu_custom_call.1} parent=1 // pred_region
      %64 = dma.done [#allocation7], 2048
    $region33: #{tpu_custom_call.1} parent=1 // pred_fallthru
      _
    %v65 = vld [vmem:[#allocation3] sm:$0xff]
    %v66 = vld [vmem:[#allocation3 + $0x8] sm:$0xff]
    %v67 = vld [vmem:[#allocation6] sm:$0xff]
    %v68 = vld [vmem:[#allocation6 + $0x8] sm:$0xff]
    %v69 = vld [vmem:[#allocation6 + $0x10] sm:$0xff]
    %v70 = vld [vmem:[#allocation6 + $0x18] sm:$0xff]
    %v71 = vld [vmem:[%s2] sm:$0x1]
    %v73 = vlaneseq
    %v74 = vshrl.u32 %v73, 7
    %v75 = vsub.s32 0, %v74
    %v76 = vrot.slane %v71, %v75
    %vm78 = vcmask 261120
    %v80 = vsel %vm78, %v65, 0
    %v83 = vsel %vm78, %v66, 0
    %85 = vmatprep.subr.mxu0 0.0
    %86 = vmatpush1.msra.mxu0 0.0
    %87 = vmatprep.subr.mxu0 0.0
    %88 = vmatpush1.msra.mxu0 0.0
    %89 = vmatprep.subr.mxu0 0.0
    %90 = vmatpush1.msra.mxu0 0.0
    %91 = vmatprep.subr.mxu0 0.0
    %92 = vmatpush1.msra.mxu0 0.0
    %93 = vmatprep.subr.mxu0 0.0
    %94 = vmatpush1.msra.mxu0 0.0
    %95 = vmatprep.subr.mxu0 0.0
    %96 = vmatpush1.msra.mxu0 0.0
    %97 = vmatprep.subr.mxu0 0.0
    %98 = vmatpush1.msra.mxu0 0.0
    %99 = vmatprep.subr.mxu0 0.0
    %100 = vmatpush1.msra.mxu0 0.0
    %101 = vmatprep.subr.mxu0 0.0
    %102 = vmatpush1.msra.mxu0 0.0
    %103 = vmatprep.subr.mxu0 0.0
    %104 = vmatpush1.msra.mxu0 0.0
    %105 = vmatprep.subr.mxu0 0.0
    %106 = vmatpush1.msra.mxu0 0.0
    %107 = vmatprep.subr.mxu0 0.0
    %108 = vmatpush1.msra.mxu0 0.0
    %109 = vmatprep.subr.mxu0 0.0
    %110 = vmatpush1.msra.mxu0 %v70
    %111 = vmatprep.subr.mxu0 0.0
    %112 = vmatpush1.msra.mxu0 %v69
    %113 = vmatprep.subr.mxu0 0.0
    %114 = vmatpush1.msra.mxu0 %v68
    %115 = vmatprep.subr.mxu0 0.0
    %116 = vmatpush1.msra.mxu0 %v67
    %117 = vmatprep.subr.mxu0 0.0
    %118 = vmatpush2.msra.mxu0 0.0
    %119 = vmatprep.subr.mxu0 0.0
    %120 = vmatpush2.msra.mxu0 0.0
    %121 = vmatprep.subr.mxu0 0.0
    %122 = vmatpush2.msra.mxu0 0.0
    %123 = vmatprep.subr.mxu0 0.0
    %124 = vmatpush2.msra.mxu0 0.0
    %125 = vmatprep.subr.mxu0 0.0
    %126 = vmatpush2.msra.mxu0 0.0
    %127 = vmatprep.subr.mxu0 0.0
    %128 = vmatpush2.msra.mxu0 0.0
    %129 = vmatprep.subr.mxu0 0.0
    %130 = vmatpush2.msra.mxu0 0.0
    %131 = vmatprep.subr.mxu0 0.0
    %132 = vmatpush2.msra.mxu0 0.0
    %133 = vmatprep.subr.mxu0 0.0
    %134 = vmatpush2.msra.mxu0 0.0
    %135 = vmatprep.subr.mxu0 0.0
    %136 = vmatpush2.msra.mxu0 0.0
    %137 = vmatprep.subr.mxu0 0.0
    %138 = vmatpush2.msra.mxu0 0.0
    %139 = vmatprep.subr.mxu0 0.0
    %140 = vmatpush2.msra.mxu0 0.0
    %141 = vmatprep.subr.mxu0 0.0
    %142 = vmatpush2.msra.mxu0 0.0
    %143 = vmatprep.subr.mxu0 0.0
    %144 = vmatpush2.msra.mxu0 0.0
    %145 = vmatprep.subr.mxu0 0.0
    %146 = vmatpush2.msra.mxu0 0.0
    %147 = vmatprep.subr.mxu0 0.0
    %148 = vmatpush2.msra.mxu0 0.0
    %149 = vmatprep.mubr.f32.mxu0 0.0
    %150 = vmatmul.mubr.f32.gmra.mxu0 %v80
    %v151 = vpop.f32.mrf.mxu0
    %v152 = vadd.f32 %v76, %v151
    %v153 = vpop.f32.mrf.mxu0
    %154 = vmatprep.mubr.f32.mxu0 0.0
    %155 = vmatmul.mubr.f32.gmra.mxu0 %v83
    %v156 = vpop.f32.mrf.mxu0
    %v157 = vadd.f32 %v76, %v156
    %v158 = vpop.f32.mrf.mxu0
    %159 = vdwg.mxu0
    %v160 = vmax.f32 %v152, 0.0
    %v161 = vmax.f32 %v157, 0.0
    %v162 = vld [vmem:[#allocation8] sm:$0xff]
    %v163 = vld [vmem:[#allocation8 + $0x8] sm:$0xff]
    %v164 = vld [vmem:[#allocation8 + $0x10] sm:$0xff]
    %v165 = vld [vmem:[#allocation8 + $0x18] sm:$0xff]
    %v166 = vld [vmem:[#allocation8 + $0x20] sm:$0xff]
    %v167 = vld [vmem:[#allocation8 + $0x28] sm:$0xff]
    %v168 = vld [vmem:[#allocation8 + $0x30] sm:$0xff]
    %v169 = vld [vmem:[#allocation8 + $0x38] sm:$0xff]
    %v170 = vld [vmem:[#allocation8 + $0x40] sm:$0xff]
    %v171 = vld [vmem:[#allocation8 + $0x48] sm:$0xff]
    %v172 = vld [vmem:[#allocation8 + $0x50] sm:$0xff]
    %v173 = vld [vmem:[#allocation8 + $0x58] sm:$0xff]
    %v174 = vld [vmem:[#allocation8 + $0x60] sm:$0xff]
    %v175 = vld [vmem:[#allocation8 + $0x68] sm:$0xff]
    %v176 = vld [vmem:[#allocation8 + $0x70] sm:$0xff]
    %v177 = vld [vmem:[#allocation8 + $0x78] sm:$0xff]
    %v178 = vld [vmem:[%s4] sm:$0x1]
    %v180 = vlaneseq
    %v181 = vshrl.u32 %v180, 7
    %v182 = vsub.s32 0, %v181
    %v183 = vrot.slane %v178, %v182
    %185 = vmatprep.subr.mxu0 0.0
    %186 = vmatpush1.msra.mxu0 %v177
    %187 = vmatprep.subr.mxu0 0.0
    %188 = vmatpush1.msra.mxu0 %v176
    %189 = vmatprep.subr.mxu0 0.0
    %190 = vmatpush1.msra.mxu0 %v175
    %191 = vmatprep.subr.mxu0 0.0
    %192 = vmatpush1.msra.mxu0 %v174
    %193 = vmatprep.subr.mxu0 0.0
    %194 = vmatpush1.msra.mxu0 %v173
    %195 = vmatprep.subr.mxu0 0.0
    %196 = vmatpush1.msra.mxu0 %v172
    %197 = vmatprep.subr.mxu0 0.0
    %198 = vmatpush1.msra.mxu0 %v171
    %199 = vmatprep.subr.mxu0 0.0
    %200 = vmatpush1.msra.mxu0 %v170
    %201 = vmatprep.subr.mxu0 0.0
    %202 = vmatpush1.msra.mxu0 %v169
    %203 = vmatprep.subr.mxu0 0.0
    %204 = vmatpush1.msra.mxu0 %v168
    %205 = vmatprep.subr.mxu0 0.0
    %206 = vmatpush1.msra.mxu0 %v167
    %207 = vmatprep.subr.mxu0 0.0
    %208 = vmatpush1.msra.mxu0 %v166
    %209 = vmatprep.subr.mxu0 0.0
    %210 = vmatpush1.msra.mxu0 %v165
    %211 = vmatprep.subr.mxu0 0.0
    %212 = vmatpush1.msra.mxu0 %v164
    %213 = vmatprep.subr.mxu0 0.0
    %214 = vmatpush1.msra.mxu0 %v163
    %215 = vmatprep.subr.mxu0 0.0
    %216 = vmatpush1.msra.mxu0 %v162
    %217 = vmatprep.subr.mxu0 0.0
    %218 = vmatpush2.msra.mxu0 0.0
    %219 = vmatprep.subr.mxu0 0.0
    %220 = vmatpush2.msra.mxu0 0.0
    %221 = vmatprep.subr.mxu0 0.0
    %222 = vmatpush2.msra.mxu0 0.0
    %223 = vmatprep.subr.mxu0 0.0
    %224 = vmatpush2.msra.mxu0 0.0
    %225 = vmatprep.subr.mxu0 0.0
    %226 = vmatpush2.msra.mxu0 0.0
    %227 = vmatprep.subr.mxu0 0.0
    %228 = vmatpush2.msra.mxu0 0.0
    %229 = vmatprep.subr.mxu0 0.0
    %230 = vmatpush2.msra.mxu0 0.0
    %231 = vmatprep.subr.mxu0 0.0
    %232 = vmatpush2.msra.mxu0 0.0
    %233 = vmatprep.subr.mxu0 0.0
    %234 = vmatpush2.msra.mxu0 0.0
    %235 = vmatprep.subr.mxu0 0.0
    %236 = vmatpush2.msra.mxu0 0.0
    %237 = vmatprep.subr.mxu0 0.0
    %238 = vmatpush2.msra.mxu0 0.0
    %239 = vmatprep.subr.mxu0 0.0
    %240 = vmatpush2.msra.mxu0 0.0
    %241 = vmatprep.subr.mxu0 0.0
    %242 = vmatpush2.msra.mxu0 0.0
    %243 = vmatprep.subr.mxu0 0.0
    %244 = vmatpush2.msra.mxu0 0.0
    %245 = vmatprep.subr.mxu0 0.0
    %246 = vmatpush2.msra.mxu0 0.0
    %247 = vmatprep.subr.mxu0 0.0
    %248 = vmatpush2.msra.mxu0 0.0
    %249 = vmatprep.mubr.f32.mxu0 0.0
    %250 = vmatmul.mubr.f32.gmra.mxu0 %v160
    %v251 = vpop.f32.mrf.mxu0
    %v252 = vadd.f32 %v183, %v251
    %v253 = vpop.f32.mrf.mxu0
    %254 = vmatprep.mubr.f32.mxu0 0.0
    %255 = vmatmul.mubr.f32.gmra.mxu0 %v161
    %v256 = vpop.f32.mrf.mxu0
    %v257 = vadd.f32 %v183, %v256
    %v258 = vpop.f32.mrf.mxu0
    %259 = vdwg.mxu0
    %v260 = vxor.u32 %v252, 2147483648
    %v261 = vxor.u32 %v257, 2147483648
    %v262 = vmul.f32 %v260, 1.442695
    %v263 = vpow.pop %v262
    %v264 = vmul.f32 %v261, 1.442695
    %v265 = vpow.pop %v264
    %v266 = vadd.f32 %v263, 1.0
    %v267 = vadd.f32 %v265, 1.0
    %v268 = vrcp.pop %v266
    %v269 = vmul.f32 1.0, %v268
    %v270 = vrcp.pop %v267
    %v271 = vmul.f32 1.0, %v270
    %v272 = vlaneseq
    %v273 = vand.u32 %v272, 127
    %vm274 = vcmp.gt.f32.partialorder %v269, 0.5
    %vm275 = vcmp.gt.f32.partialorder %v271, 0.5
    %vm276 = vcmp.lt.s32.totalorder %v273, 8
    %vm277 = vmand %vm274, %vm276
    %vm278 = vmand %vm275, %vm276
    %v279 = vsel %vm277, %v269, 0.0
    %v280 = vsel %vm278, %v271, 0.0
    %281 = vmax.xlane.f32.xlu0 %v279
    %v282 = vpop.xlane.xlu0 %281
    %283 = vmax.xlane.f32.xlu0 %v280
    %v284 = vpop.xlane.xlu0 %283
    %vm285 = vcmp.eq.f32.partialorder %v279, %v282
    %vm286 = vcmp.eq.f32.partialorder %v280, %v284
    %vm287 = vcmp.gt.f32.partialorder %v282, 0.0
    %vm288 = vcmp.gt.f32.partialorder %v284, 0.0
    %v289 = vsel %vm287, 1, 0
    %v290 = vsel %vm288, 1, 0
    %vm291 = vcmp.eq.s32.totalorder %v289, 1
    %vm292 = vcmp.eq.s32.totalorder %v290, 1
    %vm293 = vmand %vm285, %vm291
    %vm294 = vmand %vm286, %vm292
    %v295 = vsel %vm293, %v273, 128
    %v296 = vsel %vm294, %v273, 128
    %v297 = vand.u32 %v295, 65535
    %v298 = vshra.s32 %v295, 16
    %v299 = vcvt.s32.f32 %v297
    %v300 = vcvt.s32.f32 %v298
    %301 = vmin.xlane.f32.xlu0 %v300
    %v302 = vpop.xlane.xlu0 %301
    %vm303 = vcmp.eq.f32.partialorder %v300, %v302
    %v304 = vsel %vm303, %v299, inf
    %305 = vmin.xlane.f32.xlu0 %v304
    %v306 = vpop.xlane.xlu0 %305
    %v307 = vcvt.f32.s32 %v306
    %v308 = vcvt.f32.s32 %v302
    %v309 = vshll.u32 %v308, 16
    %v310 = vadd.s32 %v309, %v307
    %v311 = vand.u32 %v296, 65535
    %v312 = vshra.s32 %v296, 16
    %v313 = vcvt.s32.f32 %v311
    %v314 = vcvt.s32.f32 %v312
    %315 = vmin.xlane.f32.xlu0 %v314
    %v316 = vpop.xlane.xlu0 %315
    %vm317 = vcmp.eq.f32.partialorder %v314, %v316
    %v318 = vsel %vm317, %v313, inf
    %319 = vmin.xlane.f32.xlu0 %v318
    %v320 = vpop.xlane.xlu0 %319
    %v321 = vcvt.f32.s32 %v320
    %v322 = vcvt.f32.s32 %v316
    %v323 = vshll.u32 %v322, 16
    %v324 = vadd.s32 %v323, %v321
    %vm325 = vcmp.eq.s32.totalorder %v273, %v310
    %vm326 = vcmp.eq.s32.totalorder %v273, %v324
    %vm327 = vmand %vm293, %vm325
    %vm328 = vmand %vm294, %vm326
    %v329 = vsel %vm327, -1.0, %v279
    %v330 = vsel %vm328, -1.0, %v280
    %331 = vmax.xlane.f32.xlu0 %v329
    %v332 = vpop.xlane.xlu0 %331
    %333 = vmax.xlane.f32.xlu0 %v330
    %v334 = vpop.xlane.xlu0 %333
    %vm335 = vcmp.eq.f32.partialorder %v329, %v332
    %vm336 = vcmp.eq.f32.partialorder %v330, %v334
    %vm337 = vcmp.gt.f32.partialorder %v332, 0.0
    %vm338 = vcmp.gt.f32.partialorder %v334, 0.0
    %v339 = vsel %vm337, 1, 0
    %v340 = vsel %vm338, 1, 0
    %vm341 = vcmp.eq.s32.totalorder %v339, 1
    %vm342 = vcmp.eq.s32.totalorder %v340, 1
    %vm343 = vmand %vm335, %vm341
    %vm344 = vmand %vm336, %vm342
    %v345 = vsel %vm343, %v273, 128
    %v346 = vsel %vm344, %v273, 128
    %v347 = vand.u32 %v345, 65535
    %v348 = vshra.s32 %v345, 16
    %v349 = vcvt.s32.f32 %v347
    %v350 = vcvt.s32.f32 %v348
    %351 = vmin.xlane.f32.xlu0 %v350
    %v352 = vpop.xlane.xlu0 %351
    %vm353 = vcmp.eq.f32.partialorder %v350, %v352
    %v354 = vsel %vm353, %v349, inf
    %355 = vmin.xlane.f32.xlu0 %v354
    %v356 = vpop.xlane.xlu0 %355
    %v357 = vcvt.f32.s32 %v356
    %v358 = vcvt.f32.s32 %v352
    %v359 = vshll.u32 %v358, 16
    %v360 = vadd.s32 %v359, %v357
    %v361 = vand.u32 %v346, 65535
    %v362 = vshra.s32 %v346, 16
    %v363 = vcvt.s32.f32 %v361
    %v364 = vcvt.s32.f32 %v362
    %365 = vmin.xlane.f32.xlu0 %v364
    %v366 = vpop.xlane.xlu0 %365
    %vm367 = vcmp.eq.f32.partialorder %v364, %v366
    %v368 = vsel %vm367, %v363, inf
    %369 = vmin.xlane.f32.xlu0 %v368
    %v370 = vpop.xlane.xlu0 %369
    %v371 = vcvt.f32.s32 %v370
    %v372 = vcvt.f32.s32 %v366
    %v373 = vshll.u32 %v372, 16
    %v374 = vadd.s32 %v373, %v371
    %vm375 = vcmp.eq.s32.totalorder %v273, %v360
    %vm376 = vcmp.eq.s32.totalorder %v273, %v374
    %vm377 = vmand %vm343, %vm375
    %vm378 = vmand %vm344, %vm376
    %vm379 = vmor %vm327, %vm377
    %vm380 = vmor %vm328, %vm378
    %v381 = vsel %vm379, 1, 0
    %v382 = vsel %vm380, 1, 0
    %v383 = vcvt.s32.f32 %v381
    %v384 = vcvt.s32.f32 %v382
    %385 = vmax.xlane.f32.xlu0 %v252
    %v386 = vpop.xlane.xlu0 %385
    %387 = vmax.xlane.f32.xlu0 %v257
    %v388 = vpop.xlane.xlu0 %387
    %v389 = vsub.f32 %v252, %v386
    %v390 = vsub.f32 %v257, %v388
    %v391 = vmul.f32 %v389, 1.442695
    %v392 = vpow.pop %v391
    %v393 = vmul.f32 %v390, 1.442695
    %v394 = vpow.pop %v393
    %395 = vadd.xlane.f32.xlu0 %v392
    %v396 = vpop.xlane.xlu0 %395
    %397 = vadd.xlane.f32.xlu0 %v394
    %v398 = vpop.xlane.xlu0 %397
    %v399 = vrcp.pop %v396
    %v400 = vrcp.pop %v398
    %v401 = vmul.f32 %v392, %v399
    %v402 = vmul.f32 %v394, %v400
    %v403 = vmul.f32 %v269, %v383
    %v404 = vmul.f32 %v271, %v384
    %405 = vadd.xlane.f32.xlu0 %v403
    %v406 = vpop.xlane.xlu0 %405
    %407 = vadd.xlane.f32.xlu0 %v404
    %v408 = vpop.xlane.xlu0 %407
    %v409 = vadd.f32 %v406, 1e-06
    %v410 = vadd.f32 %v408, 1e-06
    %v411 = vrcp.pop %v409
    %v412 = vrcp.pop %v410
    %v413 = vmul.f32 %v403, %v411
    %v414 = vmul.f32 %v404, %v412
    %vm415 = vcmask 64512
    %416 = vst.msk [vmem:[#allocation9] sm:$0xff] %vm415, %v252
    %417 = vst.msk [vmem:[#allocation9 + $0x8] sm:$0xff] %vm415, %v257
    %420 = vrot.lane.b32.xlu0 %v413, 8
    %v421 = vpop.permute.xlu0 %420
    %422 = vrot.lane.b32.xlu0 %v414, 8
    %v423 = vpop.permute.xlu0 %422
    %vm426 = vcmask 130112
    %427 = vst.msk [vmem:[#allocation9] sm:$0xff] %vm426, %v421
    %428 = vst.msk [vmem:[#allocation9 + $0x8] sm:$0xff] %vm426, %v423
    %v429 = vadd.f32 %v383, %v384
    %v430 = vrot.slane %v429, 4
    %v431 = vadd.f32 %v429, %v430
    %v432 = vrot.slane %v431, 2
    %v433 = vadd.f32 %v431, %v432
    %v434 = vrot.slane %v433, 1
    %v435 = vadd.f32 %v433, %v434
    %v436 = vadd.f32 %v401, %v402
    %v437 = vrot.slane %v436, 4
    %v438 = vadd.f32 %v436, %v437
    %v439 = vrot.slane %v438, 2
    %v440 = vadd.f32 %v438, %v439
    %v441 = vrot.slane %v440, 1
    %v442 = vadd.f32 %v440, %v441
    %vm443 = vcmask 57344
    %444 = vst.msk [vmem:[#allocation10] sm:$0x1] %vm443, %v435
    %446 = vrot.lane.b32.xlu0 %v442, 8
    %v447 = vpop.permute.xlu0 %446
    %vm449 = vcmask 122944
    %450 = vst.msk [vmem:[#allocation10] sm:$0x1] %vm449, %v447
    // Predicated region
    $region34: #{tpu_custom_call.1} parent=1 // pred_check
      _
    $region35: #{tpu_custom_call.1} parent=1 // pred_check_branch
      %452 = sbr.rel (0) target = $region37
    $region36: #{tpu_custom_call.1} parent=1 // pred_region
      %s454 = ssub.s32 256, 256
      %455 = vsyncadd [#allocation5], %s454
      %s456 = sshll.u32 [#allocation9], 4
      %s457 = int_to_ptr.vmem [resolvable:$true] %s456
      %462 = dma.vmem_to_hbm [thread:$0]  %s457, 256, %s5, [#allocation5], 128, 128, 8
    $region37: #{tpu_custom_call.1} parent=1 // pred_fallthru
      _
    // Predicated region
    $region38: #{tpu_custom_call.1} parent=1 // pred_check
      _
    $region39: #{tpu_custom_call.1} parent=1 // pred_check_branch
      %464 = sbr.rel (0) target = $region41
    $region40: #{tpu_custom_call.1} parent=1 // pred_region
      %s466 = ssub.s32 16, 16
      %467 = vsyncadd [#allocation11], %s466
      %s469 = sshll.u32 [#allocation10], 4
      %s470 = int_to_ptr.vmem [resolvable:$true] %s469
      %472 = dma.vmem_to_hbm [thread:$0]  %s470, 16, %s6, [#allocation11]
    $region41: #{tpu_custom_call.1} parent=1 // pred_fallthru
      _
    // Predicated region
    $region42: #{tpu_custom_call.1} parent=1 // pred_check
      _
    $region43: #{tpu_custom_call.1} parent=1 // pred_check_branch
      %474 = sbr.rel (0) target = $region45
    $region44: #{tpu_custom_call.1} parent=1 // pred_region
      %475 = dma.done [#allocation5], 256
    $region45: #{tpu_custom_call.1} parent=1 // pred_fallthru
      _
    // Predicated region
    $region46: #{tpu_custom_call.1} parent=1 // pred_check
      _
    $region47: #{tpu_custom_call.1} parent=1 // pred_check_branch
      %477 = sbr.rel (0) target = $region49
    $region48: #{tpu_custom_call.1} parent=1 // pred_region
      %478 = dma.done [#allocation11], 16
    $region49: #{tpu_custom_call.1} parent=1 // pred_fallthru
      _
    %479 = vsyncpa [#allocation4], 1
    %480 = vsyncpa [#allocation7], 1
    %481 = vsyncpa [#allocation5], 1
    %482 = vsyncpa [#allocation11], 1

</llo_original>
